<compile_context>
chip_gen: v7x
topology: tpu7x:2x2x1
jax: 0.10.0
libtpu: 0.0.40
codegen_flags: <defaults>
</compile_context>

<pallas_src>
import functools

import numpy as np
import jax
import jax.numpy as jnp
from jax.experimental import pallas as pl
from jax.experimental.pallas import tpu as pltpu

EPS = 1e-5
C, H, W = 48, 24, 72          # channels / height / width after reshape
PH, PW = 4, 6                 # adaptive-avg-pool output grid
HW = H * W                    # 1728 pixels per (sample, channel) row
POOLED = PH * PW              # 24 pooled values per (sample, channel) row
FLAT = C * POOLED             # 1152 flattened features per sample

# 64 samples/tile -> 3072 rows, 20.25 MB per input buffer, ~41 MB double
# buffered: fits every generation (v7x: 64 MiB/TC, v5e/v6e: 128 MiB).
POOL_TILE_SAMPLES = 64
POOL_TILE_ROWS = POOL_TILE_SAMPLES * C     # 3072
MLP_TILE = 256                             # batch rows per MLP grid step

_COMPILER_PARAMS = pltpu.CompilerParams(
    dimension_semantics=("parallel",),
    # Explicit scoped-VMEM limit: above v5e's 16 MiB default, below v7x's
    # 64 MiB physical per-core VMEM.
    vmem_limit_bytes=60 * 1024 * 1024,
)


# ------------------------------- kernels ------------------------------------

def _pool_kernel(x_ref, pmat_ref, o_ref):
    # (rows_tile, 1728) @ (1728, 24) adaptive average pool on the MXU.
    o_ref[...] = jnp.dot(x_ref[...], pmat_ref[...],
                         preferred_element_type=jnp.float32)


def _mlp_kernel(x_ref, w1_ref, b1_ref, w2_ref, b2_ref, w3_ref, b3_ref,
                w4_ref, b4_ref, w5_ref, b5_ref, o_ref):
    # BatchNorm2d + BatchNorm1d are pre-folded into w1/b1 (eval mode).
    # Dropout(0.25) -> identity in eval mode.
    f32 = jnp.float32
    h = jnp.maximum(jnp.dot(x_ref[...], w1_ref[...], preferred_element_type=f32)
                    + b1_ref[...], 0.0)
    h = jnp.maximum(jnp.dot(h, w2_ref[...], preferred_element_type=f32)
                    + b2_ref[...], 0.0)
    h = jnp.maximum(jnp.dot(h, w3_ref[...], preferred_element_type=f32)
                    + b3_ref[...], 0.0)
    h = jnp.maximum(jnp.dot(h, w4_ref[...], preferred_element_type=f32)
                    + b4_ref[...], 0.0)
    o_ref[...] = jnp.dot(h, w5_ref[...], preferred_element_type=f32) + b5_ref[...]


# --------------------------- constant pooling matrix ------------------------

@functools.lru_cache(maxsize=None)
def _pool_matrix_np():
    # (1728, 24): flattened (h, w) pixel -> flattened (h//6, w//12) pool cell,
    # with mean weight 1/72.
    P = np.zeros((HW, POOLED), dtype=np.float32)
    for h in range(H):
        for w in range(W):
            P[h * W + w, (h // 6) * PW + (w // 12)] = 1.0 / 72.0
    return P


# ----------------------------- parameter setup ------------------------------

def init_params(key):
    # Linear layers (PyTorch default init); weights stored transposed (in, out).
    dims = [(FLAT, 120), (120, 48), (48, 48), (48, 48), (48, 24)]
    linears = []
    for din, dout in dims:
        key, kw, kb = jax.random.split(key, 3)
        bound = 1.0 / np.sqrt(din)
        Wm = jax.random.uniform(kw, (din, dout), jnp.float32, -bound, bound)
        bv = jax.random.uniform(kb, (1, dout), jnp.float32, -bound, bound)
        linears.append((Wm, bv))
    # BatchNorm defaults: gamma=1, beta=0, running_mean=0, running_var=1
    bn2d = (jnp.ones((C,), jnp.float32), jnp.zeros((C,), jnp.float32),
            jnp.zeros((C,), jnp.float32), jnp.ones((C,), jnp.float32))
    bn1d = (jnp.ones((12,), jnp.float32), jnp.zeros((12,), jnp.float32),
            jnp.zeros((12,), jnp.float32), jnp.ones((12,), jnp.float32))
    return {"linears": linears, "bn2d": bn2d, "bn1d": bn1d}


# ------------------------------- forward pass --------------------------------

def _net_forward_impl(x, params):
    x4 = x.reshape(-1, C, H, W)
    n = x4.shape[0]                       # == batch for any valid input
    rows = n * C

    # ---- Stage 1: adaptive average pool (row-wise MXU matmul) ---------------
    x_rows = x4.reshape(rows, HW)         # contiguous -> free reshape
    pmat = jnp.asarray(_pool_matrix_np())

    r_tile = min(POOL_TILE_ROWS, rows)    # rows is always a multiple of 48
    pooled = pl.pallas_call(
        _pool_kernel,
        out_shape=jax.ShapeDtypeStruct((rows, POOLED), jnp.float32),
        grid=(pl.cdiv(rows, r_tile),),
        in_specs=[
            pl.BlockSpec((r_tile, HW), lambda i: (i, 0)),     # streamed x rows
            pl.BlockSpec((HW, POOLED), lambda i: (0, 0)),     # constant pmat
        ],
        out_specs=pl.BlockSpec((r_tile, POOLED), lambda i: (i, 0)),
        compiler_params=_COMPILER_PARAMS,
    )(x_rows, pmat)

    # Row order of `pooled` is (sample-major, channel, pool-cell), so the
    # PyTorch flatten is a plain contiguous reshape (4.5 KB/sample -> free).
    flat = pooled.reshape(n, FLAT)

    # ---- Fold BatchNorm2d + BatchNorm1d (eval mode) into Linear-1 -----------
    g2, be2, rm2, rv2 = params["bn2d"]
    sc2 = g2 * jax.lax.rsqrt(rv2 + EPS)
    sh2 = be2 - rm2 * sc2
    g1, be1, rm1, rv1 = params["bn1d"]
    sc1 = g1 * jax.lax.rsqrt(rv1 + EPS)
    sh1 = be1 - rm1 * sc1
    # flat feature f = c*24 + s;  BN2d channel = f // 24, BN1d channel = f // 96
    scale = jnp.repeat(sc2, POOLED) * jnp.repeat(sc1, 96)                       # (1152,)
    shift = jnp.repeat(sh2, POOLED) * jnp.repeat(sc1, 96) + jnp.repeat(sh1, 96)  # (1152,)
    (w1, b1), (w2, b2), (w3, b3), (w4, b4), (w5, b5) = params["linears"]
    w1e = w1 * scale[:, None]
    b1e = b1 + (shift @ w1)[None, :]

    # ---- Stage 2: 5-layer ReLU MLP, batch-tiled ------------------------------
    tb = min(MLP_TILE, n)

    def cspec(shape):
        return pl.BlockSpec(shape, lambda i: (0, 0))

    out = pl.pallas_call(
        _mlp_kernel,
        out_shape=jax.ShapeDtypeStruct((n, 24), jnp.float32),
        grid=(pl.cdiv(n, tb),),
        in_specs=[
            pl.BlockSpec((tb, FLAT), lambda i: (i, 0)),     # flattened samples
            cspec((FLAT, 120)), cspec((1, 120)),            # l1 (BN folded)
            cspec((120, 48)), cspec((1, 48)),               # l2
            cspec((48, 48)), cspec((1, 48)),                # l3
            cspec((48, 48)), cspec((1, 48)),                # l4
            cspec((48, 24)), cspec((1, 24)),                # l5
        ],
        out_specs=pl.BlockSpec((tb, 24), lambda i: (i, 0)),
        compiler_params=_COMPILER_PARAMS,
    )(flat, w1e, b1e, w2, b2, w3, b3, w4, b4, w5, b5)
    return out


net_forward = jax.jit(_net_forward_impl)


# ------------------------------ pure-JAX reference ---------------------------

def reference(x, params):
    b = x.shape[0]
    x4 = x.reshape(-1, C, H, W)
    pooled = x4.reshape(-1, C, PH, 6, PW, 12).mean(axis=(3, 5))
    g2, be2, rm2, rv2 = params["bn2d"]
    pooled = ((pooled - rm2[None, :, None, None])
              / jnp.sqrt(rv2[None, :, None, None] + EPS)
              * g2[None, :, None, None] + be2[None, :, None, None])
    h = pooled.reshape(b, 12, -1)
    g1, be1, rm1, rv1 = params["bn1d"]
    h = ((h - rm1[None, :, None]) / jnp.sqrt(rv1[None, :, None] + EPS)
         * g1[None, :, None] + be1[None, :, None])
    h = h.reshape(b, -1)
    for i, (Wm, bv) in enumerate(params["linears"]):
        h = h @ Wm + bv[0]
        if i < 4:
            h = jnp.maximum(h, 0.0)
    return h


if __name__ == "__main__":
    key = jax.random.PRNGKey(0)
    kx, kp, kbn = jax.random.split(key, 3)
    batch = 2
    x = jax.random.normal(kx, (batch, C, H, W), jnp.float32)
    params = init_params(kp)

    # Non-default BatchNorm affine / running stats so the BN->Linear-1 fold is
    # actually exercised (review's correctness concern).
    ks = jax.random.split(kbn, 8)
    params["bn2d"] = (jax.random.uniform(ks[0], (C,), jnp.float32, 0.5, 1.5),
                      jax.random.uniform(ks[1], (C,), jnp.float32, -0.5, 0.5),
                      jax.random.uniform(ks[2], (C,), jnp.float32, -0.5, 0.5),
                      jax.random.uniform(ks[3], (C,), jnp.float32, 0.5, 1.5))
    params["bn1d"] = (jax.random.uniform(ks[4], (12,), jnp.float32, 0.5, 1.5),
                      jax.random.uniform(ks[5], (12,), jnp.float32, -0.5, 0.5),
                      jax.random.uniform(ks[6], (12,), jnp.float32, -0.5, 0.5),
                      jax.random.uniform(ks[7], (12,), jnp.float32, 0.5, 1.5))

    out = net_forward(x, params)
    jax.block_until_ready(out)

    ref = reference(x, params)
    assert out.shape == (batch, 24), out.shape
    np.testing.assert_allclose(np.asarray(out), np.asarray(ref),
                               rtol=1e-4, atol=2e-4)
    print("KERNEL_OK")
</pallas_src>

<mosaic_0001>
module attributes {stable_mosaic.version = 11 : i64} {
  func.func @_pool_kernel(%arg0: i32, %arg1: memref<96x1728xf32, #tpu.memory_space<vmem>>, %arg2: memref<1728x24xf32, #tpu.memory_space<vmem>>, %arg3: memref<96x24xf32, #tpu.memory_space<vmem>>) attributes {dimension_semantics = [#tpu.dimension_semantics<parallel>], iteration_bounds = array<i64: 1>, scalar_prefetch = 0 : i64, scratch_operands = 0 : i64, tpu.core_type = #tpu.core_type<tc>, window_params = [{transform_indices = @transform_0, window_bounds = array<i64: 96, 1728>}, {pipeline_mode = #tpu.pipeline_mode<synchronous>, transform_indices = @transform_1, window_bounds = array<i64: 1728, 24>}, {transform_indices = @transform_2, window_bounds = array<i64: 96, 24>}]} {
    %c0 = arith.constant 0 : index
    %c0_0 = arith.constant 0 : index
    %0 = vector.load %arg1[%c0, %c0_0] : memref<96x1728xf32, #tpu.memory_space<vmem>>, vector<96x1728xf32>
    %c0_1 = arith.constant 0 : index
    %c0_2 = arith.constant 0 : index
    %1 = vector.load %arg2[%c0_1, %c0_2] : memref<1728x24xf32, #tpu.memory_space<vmem>>, vector<1728x24xf32>
    %cst = arith.constant dense<0.000000e+00> : vector<96x24xf32>
    %2 = tpu.matmul %0, %1, %cst {dimension_numbers = #tpu.dot_dimension_numbers<[1], [0], [0], [1], [0, 0, 1, 1], [], []>} : vector<96x1728xf32>, vector<1728x24xf32>, vector<96x24xf32> -> vector<96x24xf32>
    %c0_3 = arith.constant 0 : index
    %c0_4 = arith.constant 0 : index
    %3 = vector.load %arg3[%c0_3, %c0_4] : memref<96x24xf32, #tpu.memory_space<vmem>>, vector<96x24xf32>
    tpu.vector_store %arg3[%c0_3, %c0_4], %2 {strides = array<i32>} : memref<96x24xf32, #tpu.memory_space<vmem>>, vector<96x24xf32>,
    return
  }
  func.func @transform_0(%arg0: i32) -> (i32, i32) {
    %c0_i32 = arith.constant 0 : i32
    %c0_i32_0 = arith.constant 0 : i32
    return %arg0, %c0_i32 : i32, i32
  }
  func.func @transform_1(%arg0: i32) -> (i32, i32) {
    %c0_i32 = arith.constant 0 : i32
    %c0_i32_0 = arith.constant 0 : i32
    %c0_i32_1 = arith.constant 0 : i32
    return %c0_i32, %c0_i32_0 : i32, i32
  }
  func.func @transform_2(%arg0: i32) -> (i32, i32) {
    %c0_i32 = arith.constant 0 : i32
    %c0_i32_0 = arith.constant 0 : i32
    return %arg0, %c0_i32 : i32, i32
  }
}

module attributes {stable_mosaic.version = 11 : i64} {
  func.func @_mlp_kernel(%arg0: i32, %arg1: memref<2x1152xf32, #tpu.memory_space<vmem>>, %arg2: memref<1152x120xf32, #tpu.memory_space<vmem>>, %arg3: memref<1x120xf32, #tpu.memory_space<vmem>>, %arg4: memref<120x48xf32, #tpu.memory_space<vmem>>, %arg5: memref<1x48xf32, #tpu.memory_space<vmem>>, %arg6: memref<48x48xf32, #tpu.memory_space<vmem>>, %arg7: memref<1x48xf32, #tpu.memory_space<vmem>>, %arg8: memref<48x48xf32, #tpu.memory_space<vmem>>, %arg9: memref<1x48xf32, #tpu.memory_space<vmem>>, %arg10: memref<48x24xf32, #tpu.memory_space<vmem>>, %arg11: memref<1x24xf32, #tpu.memory_space<vmem>>, %arg12: memref<2x24xf32, #tpu.memory_space<vmem>>) attributes {dimension_semantics = [#tpu.dimension_semantics<parallel>], iteration_bounds = array<i64: 1>, scalar_prefetch = 0 : i64, scratch_operands = 0 : i64, tpu.core_type = #tpu.core_type<tc>, window_params = [{transform_indices = @transform_0, window_bounds = array<i64: 2, 1152>}, {pipeline_mode = #tpu.pipeline_mode<synchronous>, transform_indices = @transform_1, window_bounds = array<i64: 1152, 120>}, {pipeline_mode = #tpu.pipeline_mode<synchronous>, transform_indices = @transform_2, window_bounds = array<i64: 1, 120>}, {pipeline_mode = #tpu.pipeline_mode<synchronous>, transform_indices = @transform_3, window_bounds = array<i64: 120, 48>}, {pipeline_mode = #tpu.pipeline_mode<synchronous>, transform_indices = @transform_4, window_bounds = array<i64: 1, 48>}, {pipeline_mode = #tpu.pipeline_mode<synchronous>, transform_indices = @transform_5, window_bounds = array<i64: 48, 48>}, {pipeline_mode = #tpu.pipeline_mode<synchronous>, transform_indices = @transform_6, window_bounds = array<i64: 1, 48>}, {pipeline_mode = #tpu.pipeline_mode<synchronous>, transform_indices = @transform_7, window_bounds = array<i64: 48, 48>}, {pipeline_mode = #tpu.pipeline_mode<synchronous>, transform_indices = @transform_8, window_bounds = array<i64: 1, 48>}, {pipeline_mode = #tpu.pipeline_mode<synchronous>, transform_indices = @transform_9, window_bounds = array<i64: 48, 24>}, {pipeline_mode = #tpu.pipeline_mode<synchronous>, transform_indices = @transform_10, window_bounds = array<i64: 1, 24>}, {transform_indices = @transform_11, window_bounds = array<i64: 2, 24>}]} {
    %c0 = arith.constant 0 : index
    %c0_0 = arith.constant 0 : index
    %0 = vector.load %arg1[%c0, %c0_0] : memref<2x1152xf32, #tpu.memory_space<vmem>>, vector<2x1152xf32>
    %c0_1 = arith.constant 0 : index
    %c0_2 = arith.constant 0 : index
    %1 = vector.load %arg2[%c0_1, %c0_2] : memref<1152x120xf32, #tpu.memory_space<vmem>>, vector<1152x120xf32>
    %cst = arith.constant dense<0.000000e+00> : vector<2x120xf32>
    %2 = tpu.matmul %0, %1, %cst {dimension_numbers = #tpu.dot_dimension_numbers<[1], [0], [0], [1], [0, 0, 1, 1], [], []>} : vector<2x1152xf32>, vector<1152x120xf32>, vector<2x120xf32> -> vector<2x120xf32>
    %c0_3 = arith.constant 0 : index
    %c0_4 = arith.constant 0 : index
    %3 = vector.load %arg3[%c0_3, %c0_4] : memref<1x120xf32, #tpu.memory_space<vmem>>, vector<1x120xf32>
    %4 = vector.broadcast %3 : vector<1x120xf32> to vector<2x120xf32>
    %5 = arith.addf %2, %4 : vector<2x120xf32>
    %cst_5 = arith.constant 0.000000e+00 : f32
    %6 = vector.broadcast %cst_5 : f32 to vector<2x120xf32>
    %7 = arith.maximumf %5, %6 : vector<2x120xf32>
    %c0_6 = arith.constant 0 : index
    %c0_7 = arith.constant 0 : index
    %8 = vector.load %arg4[%c0_6, %c0_7] : memref<120x48xf32, #tpu.memory_space<vmem>>, vector<120x48xf32>
    %cst_8 = arith.constant dense<0.000000e+00> : vector<2x48xf32>
    %9 = tpu.matmul %7, %8, %cst_8 {dimension_numbers = #tpu.dot_dimension_numbers<[1], [0], [0], [1], [0, 0, 1, 1], [], []>} : vector<2x120xf32>, vector<120x48xf32>, vector<2x48xf32> -> vector<2x48xf32>
    %c0_9 = arith.constant 0 : index
    %c0_10 = arith.constant 0 : index
    %10 = vector.load %arg5[%c0_9, %c0_10] : memref<1x48xf32, #tpu.memory_space<vmem>>, vector<1x48xf32>
    %11 = vector.broadcast %10 : vector<1x48xf32> to vector<2x48xf32>
    %12 = arith.addf %9, %11 : vector<2x48xf32>
    %cst_11 = arith.constant 0.000000e+00 : f32
    %13 = vector.broadcast %cst_11 : f32 to vector<2x48xf32>
    %14 = arith.maximumf %12, %13 : vector<2x48xf32>
    %c0_12 = arith.constant 0 : index
    %c0_13 = arith.constant 0 : index
    %15 = vector.load %arg6[%c0_12, %c0_13] : memref<48x48xf32, #tpu.memory_space<vmem>>, vector<48x48xf32>
    %cst_14 = arith.constant dense<0.000000e+00> : vector<2x48xf32>
    %16 = tpu.matmul %14, %15, %cst_14 {dimension_numbers = #tpu.dot_dimension_numbers<[1], [0], [0], [1], [0, 0, 1, 1], [], []>} : vector<2x48xf32>, vector<48x48xf32>, vector<2x48xf32> -> vector<2x48xf32>
    %c0_15 = arith.constant 0 : index
    %c0_16 = arith.constant 0 : index
    %17 = vector.load %arg7[%c0_15, %c0_16] : memref<1x48xf32, #tpu.memory_space<vmem>>, vector<1x48xf32>
    %18 = vector.broadcast %17 : vector<1x48xf32> to vector<2x48xf32>
    %19 = arith.addf %16, %18 : vector<2x48xf32>
    %cst_17 = arith.constant 0.000000e+00 : f32
    %20 = vector.broadcast %cst_17 : f32 to vector<2x48xf32>
    %21 = arith.maximumf %19, %20 : vector<2x48xf32>
    %c0_18 = arith.constant 0 : index
    %c0_19 = arith.constant 0 : index
    %22 = vector.load %arg8[%c0_18, %c0_19] : memref<48x48xf32, #tpu.memory_space<vmem>>, vector<48x48xf32>
    %cst_20 = arith.constant dense<0.000000e+00> : vector<2x48xf32>
    %23 = tpu.matmul %21, %22, %cst_20 {dimension_numbers = #tpu.dot_dimension_numbers<[1], [0], [0], [1], [0, 0, 1, 1], [], []>} : vector<2x48xf32>, vector<48x48xf32>, vector<2x48xf32> -> vector<2x48xf32>
    %c0_21 = arith.constant 0 : index
    %c0_22 = arith.constant 0 : index
    %24 = vector.load %arg9[%c0_21, %c0_22] : memref<1x48xf32, #tpu.memory_space<vmem>>, vector<1x48xf32>
    %25 = vector.broadcast %24 : vector<1x48xf32> to vector<2x48xf32>
    %26 = arith.addf %23, %25 : vector<2x48xf32>
    %cst_23 = arith.constant 0.000000e+00 : f32
    %27 = vector.broadcast %cst_23 : f32 to vector<2x48xf32>
    %28 = arith.maximumf %26, %27 : vector<2x48xf32>
    %c0_24 = arith.constant 0 : index
    %c0_25 = arith.constant 0 : index
    %29 = vector.load %arg10[%c0_24, %c0_25] : memref<48x24xf32, #tpu.memory_space<vmem>>, vector<48x24xf32>
    %cst_26 = arith.constant dense<0.000000e+00> : vector<2x24xf32>
    %30 = tpu.matmul %28, %29, %cst_26 {dimension_numbers = #tpu.dot_dimension_numbers<[1], [0], [0], [1], [0, 0, 1, 1], [], []>} : vector<2x48xf32>, vector<48x24xf32>, vector<2x24xf32> -> vector<2x24xf32>
    %c0_27 = arith.constant 0 : index
    %c0_28 = arith.constant 0 : index
    %31 = vector.load %arg11[%c0_27, %c0_28] : memref<1x24xf32, #tpu.memory_space<vmem>>, vector<1x24xf32>
    %32 = vector.broadcast %31 : vector<1x24xf32> to vector<2x24xf32>
    %33 = arith.addf %30, %32 : vector<2x24xf32>
    %c0_29 = arith.constant 0 : index
    %c0_30 = arith.constant 0 : index
    %34 = vector.load %arg12[%c0_29, %c0_30] : memref<2x24xf32, #tpu.memory_space<vmem>>, vector<2x24xf32>
    tpu.vector_store %arg12[%c0_29, %c0_30], %33 {strides = array<i32>} : memref<2x24xf32, #tpu.memory_space<vmem>>, vector<2x24xf32>,
    return
  }
  func.func @transform_0(%arg0: i32) -> (i32, i32) {
    %c0_i32 = arith.constant 0 : i32
    %c0_i32_0 = arith.constant 0 : i32
    return %arg0, %c0_i32 : i32, i32
  }
  func.func @transform_1(%arg0: i32) -> (i32, i32) {
    %c0_i32 = arith.constant 0 : i32
    %c0_i32_0 = arith.constant 0 : i32
    %c0_i32_1 = arith.constant 0 : i32
    return %c0_i32, %c0_i32_0 : i32, i32
  }
  func.func @transform_2(%arg0: i32) -> (i32, i32) {
    %c0_i32 = arith.constant 0 : i32
    %c0_i32_0 = arith.constant 0 : i32
    %c0_i32_1 = arith.constant 0 : i32
    return %c0_i32, %c0_i32_0 : i32, i32
  }
  func.func @transform_3(%arg0: i32) -> (i32, i32) {
    %c0_i32 = arith.constant 0 : i32
    %c0_i32_0 = arith.constant 0 : i32
    %c0_i32_1 = arith.constant 0 : i32
    return %c0_i32, %c0_i32_0 : i32, i32
  }
  func.func @transform_4(%arg0: i32) -> (i32, i32) {
    %c0_i32 = arith.constant 0 : i32
    %c0_i32_0 = arith.constant 0 : i32
    %c0_i32_1 = arith.constant 0 : i32
    return %c0_i32, %c0_i32_0 : i32, i32
  }
  func.func @transform_5(%arg0: i32) -> (i32, i32) {
    %c0_i32 = arith.constant 0 : i32
    %c0_i32_0 = arith.constant 0 : i32
    %c0_i32_1 = arith.constant 0 : i32
    return %c0_i32, %c0_i32_0 : i32, i32
  }
  func.func @transform_6(%arg0: i32) -> (i32, i32) {
    %c0_i32 = arith.constant 0 : i32
    %c0_i32_0 = arith.constant 0 : i32
    %c0_i32_1 = arith.constant 0 : i32
    return %c0_i32, %c0_i32_0 : i32, i32
  }
  func.func @transform_7(%arg0: i32) -> (i32, i32) {
    %c0_i32 = arith.constant 0 : i32
    %c0_i32_0 = arith.constant 0 : i32
    %c0_i32_1 = arith.constant 0 : i32
    return %c0_i32, %c0_i32_0 : i32, i32
  }
  func.func @transform_8(%arg0: i32) -> (i32, i32) {
    %c0_i32 = arith.constant 0 : i32
    %c0_i32_0 = arith.constant 0 : i32
    %c0_i32_1 = arith.constant 0 : i32
    return %c0_i32, %c0_i32_0 : i32, i32
  }
  func.func @transform_9(%arg0: i32) -> (i32, i32) {
    %c0_i32 = arith.constant 0 : i32
    %c0_i32_0 = arith.constant 0 : i32
    %c0_i32_1 = arith.constant 0 : i32
    return %c0_i32, %c0_i32_0 : i32, i32
  }
  func.func @transform_10(%arg0: i32) -> (i32, i32) {
    %c0_i32 = arith.constant 0 : i32
    %c0_i32_0 = arith.constant 0 : i32
    %c0_i32_1 = arith.constant 0 : i32
    return %c0_i32, %c0_i32_0 : i32, i32
  }
  func.func @transform_11(%arg0: i32) -> (i32, i32) {
    %c0_i32 = arith.constant 0 : i32
    %c0_i32_0 = arith.constant 0 : i32
    return %arg0, %c0_i32 : i32, i32
  }
}

</mosaic_0001>

<llo_original>
// kernel: _net_forward_impl.2
$region0: #{_net_forward_impl.2}
  #allocation0 [shape = 'u32[]', space=smem, size = 0x4, offset = 0x4, fixed_abs, tag = 'smem constant byte address 0x4 - core index']
  #allocation1 [shape = 'u32[144,128]{1,0:T(1,128)}', space=vmem, size = 0x12000, scoped, tag = 'internal scratch']
  %s0 = inlined_call_operand.vmem [shape: f32[96,1728], index: 0, kind: input, shape index: {}]
  %s1 = inlined_call_operand.vmem [shape: f32[1728,24], index: 1, kind: input, shape index: {}]
  %s2 = inlined_call_operand.vmem [shape: f32[96,24], index: 2, kind: output, shape index: {}]
  %s3 = sld [smem:[#allocation0]]
  $region18: #{_net_forward_impl.2} parent=0
    _
  %s5 = ssub.s32 1, %s3
  %s6 = scalar_select 0, %s5, %s3
  // Predicated region
  $region2: #{_net_forward_impl.2} parent=0 // pred_check
    _
  $region3: #{_net_forward_impl.2} parent=0 // pred_check_branch
    %8 = sbr.rel (0) target = $region5
  $region4: #{_net_forward_impl.2} parent=0 // pred_region
    _
  $region5: #{_net_forward_impl.2} parent=0 // pred_fallthru
    _
  // Predicated region
  $region6: #{_net_forward_impl.2} parent=0 // pred_check
    _
  $region7: #{_net_forward_impl.2} parent=0 // pred_check_branch
    %10 = sbr.rel (0) target = $region9
  $region8: #{_net_forward_impl.2} parent=0 // pred_region
    _
  $region9: #{_net_forward_impl.2} parent=0 // pred_fallthru
    _
  %v11 = vld [vmem:[%s0] sm:$0xff]
  %v12 = vld [vmem:[%s0 + $0x8] sm:$0xff]
  %v13 = vld [vmem:[%s0 + $0x10] sm:$0xff]
  %v14 = vld [vmem:[%s0 + $0x18] sm:$0xff]
  %v15 = vld [vmem:[%s0 + $0x20] sm:$0xff]
  %v16 = vld [vmem:[%s0 + $0x28] sm:$0xff]
  %v17 = vld [vmem:[%s0 + $0x30] sm:$0xff]
  %v18 = vld [vmem:[%s0 + $0x38] sm:$0xff]
  %v19 = vld [vmem:[%s0 + $0x40] sm:$0xff]
  %v20 = vld [vmem:[%s0 + $0x48] sm:$0xff]
  %v21 = vld [vmem:[%s0 + $0x50] sm:$0xff]
  %v22 = vld [vmem:[%s0 + $0x58] sm:$0xff]
  %v23 = vld [vmem:[%s0 + $0x60] sm:$0xff]
  %v24 = vld [vmem:[%s0 + $0x68] sm:$0xff]
  %v25 = vld [vmem:[%s0 + $0x70] sm:$0xff]
  %v26 = vld [vmem:[%s0 + $0x78] sm:$0xff]
  %v27 = vld [vmem:[%s0 + $0x80] sm:$0xff]
  %v28 = vld [vmem:[%s0 + $0x88] sm:$0xff]
  %v29 = vld [vmem:[%s0 + $0x90] sm:$0xff]
  %v30 = vld [vmem:[%s0 + $0x98] sm:$0xff]
  %v31 = vld [vmem:[%s0 + $0xa0] sm:$0xff]
  %v32 = vld [vmem:[%s0 + $0xa8] sm:$0xff]
  %v33 = vld [vmem:[%s0 + $0xb0] sm:$0xff]
  %v34 = vld [vmem:[%s0 + $0xb8] sm:$0xff]
  %v35 = vld [vmem:[%s0 + $0xc0] sm:$0xff]
  %v36 = vld [vmem:[%s0 + $0xc8] sm:$0xff]
  %v37 = vld [vmem:[%s0 + $0xd0] sm:$0xff]
  %v38 = vld [vmem:[%s0 + $0xd8] sm:$0xff]
  %v39 = vld [vmem:[%s0 + $0xe0] sm:$0xff]
  %v40 = vld [vmem:[%s0 + $0xe8] sm:$0xff]
  %v41 = vld [vmem:[%s0 + $0xf0] sm:$0xff]
  %v42 = vld [vmem:[%s0 + $0xf8] sm:$0xff]
  %v43 = vld [vmem:[%s0 + $0x100] sm:$0xff]
  %v44 = vld [vmem:[%s0 + $0x108] sm:$0xff]
  %v45 = vld [vmem:[%s0 + $0x110] sm:$0xff]
  %v46 = vld [vmem:[%s0 + $0x118] sm:$0xff]
  %v47 = vld [vmem:[%s0 + $0x120] sm:$0xff]
  %v48 = vld [vmem:[%s0 + $0x128] sm:$0xff]
  %v49 = vld [vmem:[%s0 + $0x130] sm:$0xff]
  %v50 = vld [vmem:[%s0 + $0x138] sm:$0xff]
  %v51 = vld [vmem:[%s0 + $0x140] sm:$0xff]
  %v52 = vld [vmem:[%s0 + $0x148] sm:$0xff]
  %v53 = vld [vmem:[%s0 + $0x150] sm:$0xff]
  %v54 = vld [vmem:[%s0 + $0x158] sm:$0xff]
  %v55 = vld [vmem:[%s0 + $0x160] sm:$0xff]
  %v56 = vld [vmem:[%s0 + $0x168] sm:$0xff]
  %v57 = vld [vmem:[%s0 + $0x170] sm:$0xff]
  %v58 = vld [vmem:[%s0 + $0x178] sm:$0xff]
  %v59 = vld [vmem:[%s0 + $0x180] sm:$0xff]
  %v60 = vld [vmem:[%s0 + $0x188] sm:$0xff]
  %v61 = vld [vmem:[%s0 + $0x190] sm:$0xff]
  %v62 = vld [vmem:[%s0 + $0x198] sm:$0xff]
  %v63 = vld [vmem:[%s0 + $0x1a0] sm:$0xff]
  %v64 = vld [vmem:[%s0 + $0x1a8] sm:$0xff]
  %v65 = vld [vmem:[%s0 + $0x1b0] sm:$0xff]
  %v66 = vld [vmem:[%s0 + $0x1b8] sm:$0xff]
  %v67 = vld [vmem:[%s0 + $0x1c0] sm:$0xff]
  %v68 = vld [vmem:[%s0 + $0x1c8] sm:$0xff]
  %v69 = vld [vmem:[%s0 + $0x1d0] sm:$0xff]
  %v70 = vld [vmem:[%s0 + $0x1d8] sm:$0xff]
  %v71 = vld [vmem:[%s0 + $0x1e0] sm:$0xff]
  %v72 = vld [vmem:[%s0 + $0x1e8] sm:$0xff]
  %v73 = vld [vmem:[%s0 + $0x1f0] sm:$0xff]
  %v74 = vld [vmem:[%s0 + $0x1f8] sm:$0xff]
  %v75 = vld [vmem:[%s0 + $0x200] sm:$0xff]
  %v76 = vld [vmem:[%s0 + $0x208] sm:$0xff]
  %v77 = vld [vmem:[%s0 + $0x210] sm:$0xff]
  %v78 = vld [vmem:[%s0 + $0x218] sm:$0xff]
  %v79 = vld [vmem:[%s0 + $0x220] sm:$0xff]
  %v80 = vld [vmem:[%s0 + $0x228] sm:$0xff]
  %v81 = vld [vmem:[%s0 + $0x230] sm:$0xff]
  %v82 = vld [vmem:[%s0 + $0x238] sm:$0xff]
  %v83 = vld [vmem:[%s0 + $0x240] sm:$0xff]
  %v84 = vld [vmem:[%s0 + $0x248] sm:$0xff]
  %v85 = vld [vmem:[%s0 + $0x250] sm:$0xff]
  %v86 = vld [vmem:[%s0 + $0x258] sm:$0xff]
  %v87 = vld [vmem:[%s0 + $0x260] sm:$0xff]
  %v88 = vld [vmem:[%s0 + $0x268] sm:$0xff]
  %v89 = vld [vmem:[%s0 + $0x270] sm:$0xff]
  %v90 = vld [vmem:[%s0 + $0x278] sm:$0xff]
  %v91 = vld [vmem:[%s0 + $0x280] sm:$0xff]
  %v92 = vld [vmem:[%s0 + $0x288] sm:$0xff]
  %v93 = vld [vmem:[%s0 + $0x290] sm:$0xff]
  %v94 = vld [vmem:[%s0 + $0x298] sm:$0xff]
  %v95 = vld [vmem:[%s0 + $0x2a0] sm:$0xff]
  %v96 = vld [vmem:[%s0 + $0x2a8] sm:$0xff]
  %v97 = vld [vmem:[%s0 + $0x2b0] sm:$0xff]
  %v98 = vld [vmem:[%s0 + $0x2b8] sm:$0xff]
  %v99 = vld [vmem:[%s0 + $0x2c0] sm:$0xff]
  %v100 = vld [vmem:[%s0 + $0x2c8] sm:$0xff]
  %v101 = vld [vmem:[%s0 + $0x2d0] sm:$0xff]
  %v102 = vld [vmem:[%s0 + $0x2d8] sm:$0xff]
  %v103 = vld [vmem:[%s0 + $0x2e0] sm:$0xff]
  %v104 = vld [vmem:[%s0 + $0x2e8] sm:$0xff]
  %v105 = vld [vmem:[%s0 + $0x2f0] sm:$0xff]
  %v106 = vld [vmem:[%s0 + $0x2f8] sm:$0xff]
  %v107 = vld [vmem:[%s0 + $0x300] sm:$0xff]
  %v108 = vld [vmem:[%s0 + $0x308] sm:$0xff]
  %v109 = vld [vmem:[%s0 + $0x310] sm:$0xff]
  %v110 = vld [vmem:[%s0 + $0x318] sm:$0xff]
  %v111 = vld [vmem:[%s0 + $0x320] sm:$0xff]
  %v112 = vld [vmem:[%s0 + $0x328] sm:$0xff]
  %v113 = vld [vmem:[%s0 + $0x330] sm:$0xff]
  %v114 = vld [vmem:[%s0 + $0x338] sm:$0xff]
  %v115 = vld [vmem:[%s0 + $0x340] sm:$0xff]
  %v116 = vld [vmem:[%s0 + $0x348] sm:$0xff]
  %v117 = vld [vmem:[%s0 + $0x350] sm:$0xff]
  %v118 = vld [vmem:[%s0 + $0x358] sm:$0xff]
  %v119 = vld [vmem:[%s0 + $0x360] sm:$0xff]
  %v120 = vld [vmem:[%s0 + $0x368] sm:$0xff]
  %v121 = vld [vmem:[%s0 + $0x370] sm:$0xff]
  %v122 = vld [vmem:[%s0 + $0x378] sm:$0xff]
  %v123 = vld [vmem:[%s0 + $0x380] sm:$0xff]
  %v124 = vld [vmem:[%s0 + $0x388] sm:$0xff]
  %v125 = vld [vmem:[%s0 + $0x390] sm:$0xff]
  %v126 = vld [vmem:[%s0 + $0x398] sm:$0xff]
  %v127 = vld [vmem:[%s0 + $0x3a0] sm:$0xff]
  %v128 = vld [vmem:[%s0 + $0x3a8] sm:$0xff]
  %v129 = vld [vmem:[%s0 + $0x3b0] sm:$0xff]
  %v130 = vld [vmem:[%s0 + $0x3b8] sm:$0xff]
  %v131 = vld [vmem:[%s0 + $0x3c0] sm:$0xff]
  %v132 = vld [vmem:[%s0 + $0x3c8] sm:$0xff]
  %v133 = vld [vmem:[%s0 + $0x3d0] sm:$0xff]
  %v134 = vld [vmem:[%s0 + $0x3d8] sm:$0xff]
  %v135 = vld [vmem:[%s0 + $0x3e0] sm:$0xff]
  %v136 = vld [vmem:[%s0 + $0x3e8] sm:$0xff]
  %v137 = vld [vmem:[%s0 + $0x3f0] sm:$0xff]
  %v138 = vld [vmem:[%s0 + $0x3f8] sm:$0xff]
  %v139 = vld [vmem:[%s0 + $0x400] sm:$0xff]
  %v140 = vld [vmem:[%s0 + $0x408] sm:$0xff]
  %v141 = vld [vmem:[%s0 + $0x410] sm:$0xff]
  %v142 = vld [vmem:[%s0 + $0x418] sm:$0xff]
  %v143 = vld [vmem:[%s0 + $0x420] sm:$0xff]
  %v144 = vld [vmem:[%s0 + $0x428] sm:$0xff]
  %v145 = vld [vmem:[%s0 + $0x430] sm:$0xff]
  %v146 = vld [vmem:[%s0 + $0x438] sm:$0xff]
  %v147 = vld [vmem:[%s0 + $0x440] sm:$0xff]
  %v148 = vld [vmem:[%s0 + $0x448] sm:$0xff]
  %v149 = vld [vmem:[%s0 + $0x450] sm:$0xff]
  %v150 = vld [vmem:[%s0 + $0x458] sm:$0xff]
  %v151 = vld [vmem:[%s0 + $0x460] sm:$0xff]
  %v152 = vld [vmem:[%s0 + $0x468] sm:$0xff]
  %v153 = vld [vmem:[%s0 + $0x470] sm:$0xff]
  %v154 = vld [vmem:[%s0 + $0x478] sm:$0xff]
  %v155 = vld [vmem:[%s0 + $0x480] sm:$0xff]
  %v156 = vld [vmem:[%s0 + $0x488] sm:$0xff]
  %v157 = vld [vmem:[%s0 + $0x490] sm:$0xff]
  %v158 = vld [vmem:[%s0 + $0x498] sm:$0xff]
  %v159 = vld [vmem:[%s0 + $0x4a0] sm:$0xff]
  %v160 = vld [vmem:[%s0 + $0x4a8] sm:$0xff]
  %v161 = vld [vmem:[%s0 + $0x4b0] sm:$0xff]
  %v162 = vld [vmem:[%s0 + $0x4b8] sm:$0xff]
  %v163 = vld [vmem:[%s0 + $0x4c0] sm:$0xff]
  %v164 = vld [vmem:[%s0 + $0x4c8] sm:$0xff]
  %v165 = vld [vmem:[%s0 + $0x4d0] sm:$0xff]
  %v166 = vld [vmem:[%s0 + $0x4d8] sm:$0xff]
  %v167 = vld [vmem:[%s0 + $0x4e0] sm:$0xff]
  %v168 = vld [vmem:[%s0 + $0x4e8] sm:$0xff]
  %v169 = vld [vmem:[%s0 + $0x4f0] sm:$0xff]
  %v170 = vld [vmem:[%s0 + $0x4f8] sm:$0xff]
  %v171 = vld [vmem:[%s0 + $0x500] sm:$0xff]
  %v172 = vld [vmem:[%s0 + $0x508] sm:$0xff]
  %v173 = vld [vmem:[%s0 + $0x510] sm:$0xff]
  %v174 = vld [vmem:[%s0 + $0x518] sm:$0xff]
  %v175 = vld [vmem:[%s0 + $0x520] sm:$0xff]
  %v176 = vld [vmem:[%s0 + $0x528] sm:$0xff]
  %v177 = vld [vmem:[%s0 + $0x530] sm:$0xff]
  %v178 = vld [vmem:[%s0 + $0x538] sm:$0xff]
  %v179 = vld [vmem:[%s1] sm:$0xff]
  %v180 = vld [vmem:[%s1 + $0x8] sm:$0xff]
  %v181 = vld [vmem:[%s1 + $0x10] sm:$0xff]
  %v182 = vld [vmem:[%s1 + $0x18] sm:$0xff]
  %v183 = vld [vmem:[%s1 + $0x20] sm:$0xff]
  %v184 = vld [vmem:[%s1 + $0x28] sm:$0xff]
  %v185 = vld [vmem:[%s1 + $0x30] sm:$0xff]
  %v186 = vld [vmem:[%s1 + $0x38] sm:$0xff]
  %v187 = vld [vmem:[%s1 + $0x40] sm:$0xff]
  %v188 = vld [vmem:[%s1 + $0x48] sm:$0xff]
  %v189 = vld [vmem:[%s1 + $0x50] sm:$0xff]
  %v190 = vld [vmem:[%s1 + $0x58] sm:$0xff]
  %v191 = vld [vmem:[%s1 + $0x60] sm:$0xff]
  %v192 = vld [vmem:[%s1 + $0x68] sm:$0xff]
  %v193 = vld [vmem:[%s1 + $0x70] sm:$0xff]
  %v194 = vld [vmem:[%s1 + $0x78] sm:$0xff]
  %v195 = vld [vmem:[%s1 + $0x80] sm:$0xff]
  %v196 = vld [vmem:[%s1 + $0x88] sm:$0xff]
  %v197 = vld [vmem:[%s1 + $0x90] sm:$0xff]
  %v198 = vld [vmem:[%s1 + $0x98] sm:$0xff]
  %v199 = vld [vmem:[%s1 + $0xa0] sm:$0xff]
  %v200 = vld [vmem:[%s1 + $0xa8] sm:$0xff]
  %v201 = vld [vmem:[%s1 + $0xb0] sm:$0xff]
  %v202 = vld [vmem:[%s1 + $0xb8] sm:$0xff]
  %v203 = vld [vmem:[%s1 + $0xc0] sm:$0xff]
  %v204 = vld [vmem:[%s1 + $0xc8] sm:$0xff]
  %v205 = vld [vmem:[%s1 + $0xd0] sm:$0xff]
  %v206 = vld [vmem:[%s1 + $0xd8] sm:$0xff]
  %v207 = vld [vmem:[%s1 + $0xe0] sm:$0xff]
  %v208 = vld [vmem:[%s1 + $0xe8] sm:$0xff]
  %v209 = vld [vmem:[%s1 + $0xf0] sm:$0xff]
  %v210 = vld [vmem:[%s1 + $0xf8] sm:$0xff]
  %v211 = vld [vmem:[%s1 + $0x100] sm:$0xff]
  %v212 = vld [vmem:[%s1 + $0x108] sm:$0xff]
  %v213 = vld [vmem:[%s1 + $0x110] sm:$0xff]
  %v214 = vld [vmem:[%s1 + $0x118] sm:$0xff]
  %v215 = vld [vmem:[%s1 + $0x120] sm:$0xff]
  %v216 = vld [vmem:[%s1 + $0x128] sm:$0xff]
  %v217 = vld [vmem:[%s1 + $0x130] sm:$0xff]
  %v218 = vld [vmem:[%s1 + $0x138] sm:$0xff]
  %v219 = vld [vmem:[%s1 + $0x140] sm:$0xff]
  %v220 = vld [vmem:[%s1 + $0x148] sm:$0xff]
  %v221 = vld [vmem:[%s1 + $0x150] sm:$0xff]
  %v222 = vld [vmem:[%s1 + $0x158] sm:$0xff]
  %v223 = vld [vmem:[%s1 + $0x160] sm:$0xff]
  %v224 = vld [vmem:[%s1 + $0x168] sm:$0xff]
  %v225 = vld [vmem:[%s1 + $0x170] sm:$0xff]
  %v226 = vld [vmem:[%s1 + $0x178] sm:$0xff]
  %v227 = vld [vmem:[%s1 + $0x180] sm:$0xff]
  %v228 = vld [vmem:[%s1 + $0x188] sm:$0xff]
  %v229 = vld [vmem:[%s1 + $0x190] sm:$0xff]
  %v230 = vld [vmem:[%s1 + $0x198] sm:$0xff]
  %v231 = vld [vmem:[%s1 + $0x1a0] sm:$0xff]
  %v232 = vld [vmem:[%s1 + $0x1a8] sm:$0xff]
  %v233 = vld [vmem:[%s1 + $0x1b0] sm:$0xff]
  %v234 = vld [vmem:[%s1 + $0x1b8] sm:$0xff]
  %v235 = vld [vmem:[%s1 + $0x1c0] sm:$0xff]
  %v236 = vld [vmem:[%s1 + $0x1c8] sm:$0xff]
  %v237 = vld [vmem:[%s1 + $0x1d0] sm:$0xff]
  %v238 = vld [vmem:[%s1 + $0x1d8] sm:$0xff]
  %v239 = vld [vmem:[%s1 + $0x1e0] sm:$0xff]
  %v240 = vld [vmem:[%s1 + $0x1e8] sm:$0xff]
  %v241 = vld [vmem:[%s1 + $0x1f0] sm:$0xff]
  %v242 = vld [vmem:[%s1 + $0x1f8] sm:$0xff]
  %v243 = vld [vmem:[%s1 + $0x200] sm:$0xff]
  %v244 = vld [vmem:[%s1 + $0x208] sm:$0xff]
  %v245 = vld [vmem:[%s1 + $0x210] sm:$0xff]
  %v246 = vld [vmem:[%s1 + $0x218] sm:$0xff]
  %v247 = vld [vmem:[%s1 + $0x220] sm:$0xff]
  %v248 = vld [vmem:[%s1 + $0x228] sm:$0xff]
  %v249 = vld [vmem:[%s1 + $0x230] sm:$0xff]
  %v250 = vld [vmem:[%s1 + $0x238] sm:$0xff]
  %v251 = vld [vmem:[%s1 + $0x240] sm:$0xff]
  %v252 = vld [vmem:[%s1 + $0x248] sm:$0xff]
  %v253 = vld [vmem:[%s1 + $0x250] sm:$0xff]
  %v254 = vld [vmem:[%s1 + $0x258] sm:$0xff]
  %v255 = vld [vmem:[%s1 + $0x260] sm:$0xff]
  %v256 = vld [vmem:[%s1 + $0x268] sm:$0xff]
  %v257 = vld [vmem:[%s1 + $0x270] sm:$0xff]
  %v258 = vld [vmem:[%s1 + $0x278] sm:$0xff]
  %v259 = vld [vmem:[%s1 + $0x280] sm:$0xff]
  %v260 = vld [vmem:[%s1 + $0x288] sm:$0xff]
  %v261 = vld [vmem:[%s1 + $0x290] sm:$0xff]
  %v262 = vld [vmem:[%s1 + $0x298] sm:$0xff]
  %v263 = vld [vmem:[%s1 + $0x2a0] sm:$0xff]
  %v264 = vld [vmem:[%s1 + $0x2a8] sm:$0xff]
  %v265 = vld [vmem:[%s1 + $0x2b0] sm:$0xff]
  %v266 = vld [vmem:[%s1 + $0x2b8] sm:$0xff]
  %v267 = vld [vmem:[%s1 + $0x2c0] sm:$0xff]
  %v268 = vld [vmem:[%s1 + $0x2c8] sm:$0xff]
  %v269 = vld [vmem:[%s1 + $0x2d0] sm:$0xff]
  %v270 = vld [vmem:[%s1 + $0x2d8] sm:$0xff]
  %v271 = vld [vmem:[%s1 + $0x2e0] sm:$0xff]
  %v272 = vld [vmem:[%s1 + $0x2e8] sm:$0xff]
  %v273 = vld [vmem:[%s1 + $0x2f0] sm:$0xff]
  %v274 = vld [vmem:[%s1 + $0x2f8] sm:$0xff]
  %v275 = vld [vmem:[%s1 + $0x300] sm:$0xff]
  %v276 = vld [vmem:[%s1 + $0x308] sm:$0xff]
  %v277 = vld [vmem:[%s1 + $0x310] sm:$0xff]
  %v278 = vld [vmem:[%s1 + $0x318] sm:$0xff]
  %v279 = vld [vmem:[%s1 + $0x320] sm:$0xff]
  %v280 = vld [vmem:[%s1 + $0x328] sm:$0xff]
  %v281 = vld [vmem:[%s1 + $0x330] sm:$0xff]
  %v282 = vld [vmem:[%s1 + $0x338] sm:$0xff]
  %v283 = vld [vmem:[%s1 + $0x340] sm:$0xff]
  %v284 = vld [vmem:[%s1 + $0x348] sm:$0xff]
  %v285 = vld [vmem:[%s1 + $0x350] sm:$0xff]
  %v286 = vld [vmem:[%s1 + $0x358] sm:$0xff]
  %v287 = vld [vmem:[%s1 + $0x360] sm:$0xff]
  %v288 = vld [vmem:[%s1 + $0x368] sm:$0xff]
  %v289 = vld [vmem:[%s1 + $0x370] sm:$0xff]
  %v290 = vld [vmem:[%s1 + $0x378] sm:$0xff]
  %v291 = vld [vmem:[%s1 + $0x380] sm:$0xff]
  %v292 = vld [vmem:[%s1 + $0x388] sm:$0xff]
  %v293 = vld [vmem:[%s1 + $0x390] sm:$0xff]
  %v294 = vld [vmem:[%s1 + $0x398] sm:$0xff]
  %v295 = vld [vmem:[%s1 + $0x3a0] sm:$0xff]
  %v296 = vld [vmem:[%s1 + $0x3a8] sm:$0xff]
  %v297 = vld [vmem:[%s1 + $0x3b0] sm:$0xff]
  %v298 = vld [vmem:[%s1 + $0x3b8] sm:$0xff]
  %v299 = vld [vmem:[%s1 + $0x3c0] sm:$0xff]
  %v300 = vld [vmem:[%s1 + $0x3c8] sm:$0xff]
  %v301 = vld [vmem:[%s1 + $0x3d0] sm:$0xff]
  %v302 = vld [vmem:[%s1 + $0x3d8] sm:$0xff]
  %v303 = vld [vmem:[%s1 + $0x3e0] sm:$0xff]
  %v304 = vld [vmem:[%s1 + $0x3e8] sm:$0xff]
  %v305 = vld [vmem:[%s1 + $0x3f0] sm:$0xff]
  %v306 = vld [vmem:[%s1 + $0x3f8] sm:$0xff]
  %v307 = vld [vmem:[%s1 + $0x400] sm:$0xff]
  %v308 = vld [vmem:[%s1 + $0x408] sm:$0xff]
  %v309 = vld [vmem:[%s1 + $0x410] sm:$0xff]
  %v310 = vld [vmem:[%s1 + $0x418] sm:$0xff]
  %v311 = vld [vmem:[%s1 + $0x420] sm:$0xff]
  %v312 = vld [vmem:[%s1 + $0x428] sm:$0xff]
  %v313 = vld [vmem:[%s1 + $0x430] sm:$0xff]
  %v314 = vld [vmem:[%s1 + $0x438] sm:$0xff]
  %v315 = vld [vmem:[%s1 + $0x440] sm:$0xff]
  %v316 = vld [vmem:[%s1 + $0x448] sm:$0xff]
  %v317 = vld [vmem:[%s1 + $0x450] sm:$0xff]
  %v318 = vld [vmem:[%s1 + $0x458] sm:$0xff]
  %v319 = vld [vmem:[%s1 + $0x460] sm:$0xff]
  %v320 = vld [vmem:[%s1 + $0x468] sm:$0xff]
  %v321 = vld [vmem:[%s1 + $0x470] sm:$0xff]
  %v322 = vld [vmem:[%s1 + $0x478] sm:$0xff]
  %v323 = vld [vmem:[%s1 + $0x480] sm:$0xff]
  %v324 = vld [vmem:[%s1 + $0x488] sm:$0xff]
  %v325 = vld [vmem:[%s1 + $0x490] sm:$0xff]
  %v326 = vld [vmem:[%s1 + $0x498] sm:$0xff]
  %v327 = vld [vmem:[%s1 + $0x4a0] sm:$0xff]
  %v328 = vld [vmem:[%s1 + $0x4a8] sm:$0xff]
  %v329 = vld [vmem:[%s1 + $0x4b0] sm:$0xff]
  %v330 = vld [vmem:[%s1 + $0x4b8] sm:$0xff]
  %v331 = vld [vmem:[%s1 + $0x4c0] sm:$0xff]
  %v332 = vld [vmem:[%s1 + $0x4c8] sm:$0xff]
  %v333 = vld [vmem:[%s1 + $0x4d0] sm:$0xff]
  %v334 = vld [vmem:[%s1 + $0x4d8] sm:$0xff]
  %v335 = vld [vmem:[%s1 + $0x4e0] sm:$0xff]
  %v336 = vld [vmem:[%s1 + $0x4e8] sm:$0xff]
  %v337 = vld [vmem:[%s1 + $0x4f0] sm:$0xff]
  %v338 = vld [vmem:[%s1 + $0x4f8] sm:$0xff]
  %v339 = vld [vmem:[%s1 + $0x500] sm:$0xff]
  %v340 = vld [vmem:[%s1 + $0x508] sm:$0xff]
  %v341 = vld [vmem:[%s1 + $0x510] sm:$0xff]
  %v342 = vld [vmem:[%s1 + $0x518] sm:$0xff]
  %v343 = vld [vmem:[%s1 + $0x520] sm:$0xff]
  %v344 = vld [vmem:[%s1 + $0x528] sm:$0xff]
  %v345 = vld [vmem:[%s1 + $0x530] sm:$0xff]
  %v346 = vld [vmem:[%s1 + $0x538] sm:$0xff]
  %v347 = vld [vmem:[%s1 + $0x540] sm:$0xff]
  %v348 = vld [vmem:[%s1 + $0x548] sm:$0xff]
  %v349 = vld [vmem:[%s1 + $0x550] sm:$0xff]
  %v350 = vld [vmem:[%s1 + $0x558] sm:$0xff]
  %v351 = vld [vmem:[%s1 + $0x560] sm:$0xff]
  %v352 = vld [vmem:[%s1 + $0x568] sm:$0xff]
  %v353 = vld [vmem:[%s1 + $0x570] sm:$0xff]
  %v354 = vld [vmem:[%s1 + $0x578] sm:$0xff]
  %v355 = vld [vmem:[%s1 + $0x580] sm:$0xff]
  %v356 = vld [vmem:[%s1 + $0x588] sm:$0xff]
  %v357 = vld [vmem:[%s1 + $0x590] sm:$0xff]
  %v358 = vld [vmem:[%s1 + $0x598] sm:$0xff]
  %v359 = vld [vmem:[%s1 + $0x5a0] sm:$0xff]
  %v360 = vld [vmem:[%s1 + $0x5a8] sm:$0xff]
  %v361 = vld [vmem:[%s1 + $0x5b0] sm:$0xff]
  %v362 = vld [vmem:[%s1 + $0x5b8] sm:$0xff]
  %v363 = vld [vmem:[%s1 + $0x5c0] sm:$0xff]
  %v364 = vld [vmem:[%s1 + $0x5c8] sm:$0xff]
  %v365 = vld [vmem:[%s1 + $0x5d0] sm:$0xff]
  %v366 = vld [vmem:[%s1 + $0x5d8] sm:$0xff]
  %v367 = vld [vmem:[%s1 + $0x5e0] sm:$0xff]
  %v368 = vld [vmem:[%s1 + $0x5e8] sm:$0xff]
  %v369 = vld [vmem:[%s1 + $0x5f0] sm:$0xff]
  %v370 = vld [vmem:[%s1 + $0x5f8] sm:$0xff]
  %v371 = vld [vmem:[%s1 + $0x600] sm:$0xff]
  %v372 = vld [vmem:[%s1 + $0x608] sm:$0xff]
  %v373 = vld [vmem:[%s1 + $0x610] sm:$0xff]
  %v374 = vld [vmem:[%s1 + $0x618] sm:$0xff]
  %v375 = vld [vmem:[%s1 + $0x620] sm:$0xff]
  %v376 = vld [vmem:[%s1 + $0x628] sm:$0xff]
  %v377 = vld [vmem:[%s1 + $0x630] sm:$0xff]
  %v378 = vld [vmem:[%s1 + $0x638] sm:$0xff]
  %v379 = vld [vmem:[%s1 + $0x640] sm:$0xff]
  %v380 = vld [vmem:[%s1 + $0x648] sm:$0xff]
  %v381 = vld [vmem:[%s1 + $0x650] sm:$0xff]
  %v382 = vld [vmem:[%s1 + $0x658] sm:$0xff]
  %v383 = vld [vmem:[%s1 + $0x660] sm:$0xff]
  %v384 = vld [vmem:[%s1 + $0x668] sm:$0xff]
  %v385 = vld [vmem:[%s1 + $0x670] sm:$0xff]
  %v386 = vld [vmem:[%s1 + $0x678] sm:$0xff]
  %v387 = vld [vmem:[%s1 + $0x680] sm:$0xff]
  %v388 = vld [vmem:[%s1 + $0x688] sm:$0xff]
  %v389 = vld [vmem:[%s1 + $0x690] sm:$0xff]
  %v390 = vld [vmem:[%s1 + $0x698] sm:$0xff]
  %v391 = vld [vmem:[%s1 + $0x6a0] sm:$0xff]
  %v392 = vld [vmem:[%s1 + $0x6a8] sm:$0xff]
  %v393 = vld [vmem:[%s1 + $0x6b0] sm:$0xff]
  %v394 = vld [vmem:[%s1 + $0x6b8] sm:$0xff]
  %vm395 = vcmask 523264
  %v397 = vsel %vm395, %v24, 0
  %v400 = vsel %vm395, %v38, 0
  %v403 = vsel %vm395, %v52, 0
  %v406 = vsel %vm395, %v66, 0
  %v409 = vsel %vm395, %v80, 0
  %v412 = vsel %vm395, %v94, 0
  %v415 = vsel %vm395, %v108, 0
  %v418 = vsel %vm395, %v122, 0
  %v421 = vsel %vm395, %v136, 0
  %v424 = vsel %vm395, %v150, 0
  %v427 = vsel %vm395, %v164, 0
  %v430 = vsel %vm395, %v178, 0
  %432 = vmatprep.subr.mxu0 0.0
  %433 = vmatpush1.msra.mxu0 %v179
  %434 = vmatprep.subr.mxu0 0.0
  %435 = vmatpush1.msra.mxu0 %v180
  %436 = vmatprep.subr.mxu0 0.0
  %437 = vmatpush1.msra.mxu0 %v181
  %438 = vmatprep.subr.mxu0 0.0
  %439 = vmatpush1.msra.mxu0 %v182
  %440 = vmatprep.subr.mxu0 0.0
  %441 = vmatpush1.msra.mxu0 %v183
  %442 = vmatprep.subr.mxu0 0.0
  %443 = vmatpush1.msra.mxu0 %v184
  %444 = vmatprep.subr.mxu0 0.0
  %445 = vmatpush1.msra.mxu0 %v185
  %446 = vmatprep.subr.mxu0 0.0
  %447 = vmatpush1.msra.mxu0 %v186
  %448 = vmatprep.subr.mxu0 0.0
  %449 = vmatpush1.msra.mxu0 %v187
  %450 = vmatprep.subr.mxu0 0.0
  %451 = vmatpush1.msra.mxu0 %v188
  %452 = vmatprep.subr.mxu0 0.0
  %453 = vmatpush1.msra.mxu0 %v189
  %454 = vmatprep.subr.mxu0 0.0
  %455 = vmatpush1.msra.mxu0 %v190
  %456 = vmatprep.subr.mxu0 0.0
  %457 = vmatpush1.msra.mxu0 %v191
  %458 = vmatprep.subr.mxu0 0.0
  %459 = vmatpush1.msra.mxu0 %v192
  %460 = vmatprep.subr.mxu0 0.0
  %461 = vmatpush1.msra.mxu0 %v193
  %462 = vmatprep.subr.mxu0 0.0
  %463 = vmatpush1.msra.mxu0 %v194
  %464 = vmatprep.subr.mxu0 0.0
  %465 = vmatpush1.msra.mxu0 %v195
  %466 = vmatprep.subr.mxu0 0.0
  %467 = vmatpush1.msra.mxu0 %v196
  %468 = vmatprep.subr.mxu0 0.0
  %469 = vmatpush1.msra.mxu0 %v197
  %470 = vmatprep.subr.mxu0 0.0
  %471 = vmatpush1.msra.mxu0 %v198
  %472 = vmatprep.subr.mxu0 0.0
  %473 = vmatpush1.msra.mxu0 %v199
  %474 = vmatprep.subr.mxu0 0.0
  %475 = vmatpush1.msra.mxu0 %v200
  %476 = vmatprep.subr.mxu0 0.0
  %477 = vmatpush1.msra.mxu0 %v201
  %478 = vmatprep.subr.mxu0 0.0
  %479 = vmatpush1.msra.mxu0 %v202
  %480 = vmatprep.subr.mxu0 0.0
  %481 = vmatpush1.msra.mxu0 %v203
  %482 = vmatprep.subr.mxu0 0.0
  %483 = vmatpush1.msra.mxu0 %v204
  %484 = vmatprep.subr.mxu0 0.0
  %485 = vmatpush1.msra.mxu0 %v205
  %486 = vmatprep.subr.mxu0 0.0
  %487 = vmatpush1.msra.mxu0 %v206
  %488 = vmatprep.subr.mxu0 0.0
  %489 = vmatpush1.msra.mxu0 %v207
  %490 = vmatprep.subr.mxu0 0.0
  %491 = vmatpush1.msra.mxu0 %v208
  %492 = vmatprep.subr.mxu0 0.0
  %493 = vmatpush1.msra.mxu0 %v209
  %494 = vmatprep.subr.mxu0 0.0
  %495 = vmatpush1.msra.mxu0 %v210
  %496 = vmatprep.mubr.f32.mxu0 %v12
  %497 = vmatmul.mubr.f32.gmra.mrb[0].mxu0 %v11
  %v498 = vpop.f32.mrb[0].mxu0
  %v499 = vadd.f32 0.0, %v498
  %v500 = vpop.f32.mrb[0].mxu0
  %501 = vmatprep.mubr.f32.mxu0 %v26
  %502 = vmatmul.mubr.f32.gmra.mrb[0].mxu0 %v25
  %v503 = vpop.f32.mrb[0].mxu0
  %v504 = vadd.f32 0.0, %v503
  %v505 = vpop.f32.mrb[0].mxu0
  %506 = vmatprep.mubr.f32.mxu0 %v40
  %507 = vmatmul.mubr.f32.gmra.mrb[0].mxu0 %v39
  %v508 = vpop.f32.mrb[0].mxu0
  %v509 = vadd.f32 0.0, %v508
  %v510 = vpop.f32.mrb[0].mxu0
  %511 = vmatprep.mubr.f32.mxu0 %v54
  %512 = vmatmul.mubr.f32.gmra.mrb[0].mxu0 %v53
  %v513 = vpop.f32.mrb[0].mxu0
  %v514 = vadd.f32 0.0, %v513
  %v515 = vpop.f32.mrb[0].mxu0
  %516 = vmatprep.mubr.f32.mxu0 %v68
  %517 = vmatmul.mubr.f32.gmra.mrb[0].mxu0 %v67
  %v518 = vpop.f32.mrb[0].mxu0
  %v519 = vadd.f32 0.0, %v518
  %v520 = vpop.f32.mrb[0].mxu0
  %521 = vmatprep.mubr.f32.mxu0 %v82
  %522 = vmatmul.mubr.f32.gmra.mrb[0].mxu0 %v81
  %v523 = vpop.f32.mrb[0].mxu0
  %v524 = vadd.f32 0.0, %v523
  %v525 = vpop.f32.mrb[0].mxu0
  %526 = vmatprep.mubr.f32.mxu0 %v96
  %527 = vmatmul.mubr.f32.gmra.mrb[0].mxu0 %v95
  %v528 = vpop.f32.mrb[0].mxu0
  %v529 = vadd.f32 0.0, %v528
  %v530 = vpop.f32.mrb[0].mxu0
  %531 = vmatprep.mubr.f32.mxu0 %v110
  %532 = vmatmul.mubr.f32.gmra.mrb[0].mxu0 %v109
  %v533 = vpop.f32.mrb[0].mxu0
  %v534 = vadd.f32 0.0, %v533
  %v535 = vpop.f32.mrb[0].mxu0
  %536 = vmatprep.mubr.f32.mxu0 %v124
  %537 = vmatmul.mubr.f32.gmra.mrb[0].mxu0 %v123
  %v538 = vpop.f32.mrb[0].mxu0
  %v539 = vadd.f32 0.0, %v538
  %v540 = vpop.f32.mrb[0].mxu0
  %541 = vmatprep.mubr.f32.mxu0 %v138
  %542 = vmatmul.mubr.f32.gmra.mrb[0].mxu0 %v137
  %v543 = vpop.f32.mrb[0].mxu0
  %v544 = vadd.f32 0.0, %v543
  %v545 = vpop.f32.mrb[0].mxu0
  %546 = vmatprep.mubr.f32.mxu0 %v152
  %547 = vmatmul.mubr.f32.gmra.mrb[0].mxu0 %v151
  %v548 = vpop.f32.mrb[0].mxu0
  %v549 = vadd.f32 0.0, %v548
  %v550 = vpop.f32.mrb[0].mxu0
  %551 = vmatprep.mubr.f32.mxu0 %v166
  %552 = vmatmul.mubr.f32.gmra.mrb[0].mxu0 %v165
  %v553 = vpop.f32.mrb[0].mxu0
  %v554 = vadd.f32 0.0, %v553
  %v555 = vpop.f32.mrb[0].mxu0
  %556 = vdwg.mxu0
  %557 = vmatprep.subr.mxu0 0.0
  %558 = vmatpush1.msra.mxu0 %v211
  %559 = vmatprep.subr.mxu0 0.0
  %560 = vmatpush1.msra.mxu0 %v212
  %561 = vmatprep.subr.mxu0 0.0
  %562 = vmatpush1.msra.mxu0 %v213
  %563 = vmatprep.subr.mxu0 0.0
  %564 = vmatpush1.msra.mxu0 %v214
  %565 = vmatprep.subr.mxu0 0.0
  %566 = vmatpush1.msra.mxu0 %v215
  %567 = vmatprep.subr.mxu0 0.0
  %568 = vmatpush1.msra.mxu0 %v216
  %569 = vmatprep.subr.mxu0 0.0
  %570 = vmatpush1.msra.mxu0 %v217
  %571 = vmatprep.subr.mxu0 0.0
  %572 = vmatpush1.msra.mxu0 %v218
  %573 = vmatprep.subr.mxu0 0.0
  %574 = vmatpush1.msra.mxu0 %v219
  %575 = vmatprep.subr.mxu0 0.0
  %576 = vmatpush1.msra.mxu0 %v220
  %577 = vmatprep.subr.mxu0 0.0
  %578 = vmatpush1.msra.mxu0 %v221
  %579 = vmatprep.subr.mxu0 0.0
  %580 = vmatpush1.msra.mxu0 %v222
  %581 = vmatprep.subr.mxu0 0.0
  %582 = vmatpush1.msra.mxu0 %v223
  %583 = vmatprep.subr.mxu0 0.0
  %584 = vmatpush1.msra.mxu0 %v224
  %585 = vmatprep.subr.mxu0 0.0
  %586 = vmatpush1.msra.mxu0 %v225
  %587 = vmatprep.subr.mxu0 0.0
  %588 = vmatpush1.msra.mxu0 %v226
  %589 = vmatprep.subr.mxu0 0.0
  %590 = vmatpush1.msra.mxu0 %v227
  %591 = vmatprep.subr.mxu0 0.0
  %592 = vmatpush1.msra.mxu0 %v228
  %593 = vmatprep.subr.mxu0 0.0
  %594 = vmatpush1.msra.mxu0 %v229
  %595 = vmatprep.subr.mxu0 0.0
  %596 = vmatpush1.msra.mxu0 %v230
  %597 = vmatprep.subr.mxu0 0.0
  %598 = vmatpush1.msra.mxu0 %v231
  %599 = vmatprep.subr.mxu0 0.0
  %600 = vmatpush1.msra.mxu0 %v232
  %601 = vmatprep.subr.mxu0 0.0
  %602 = vmatpush1.msra.mxu0 %v233
  %603 = vmatprep.subr.mxu0 0.0
  %604 = vmatpush1.msra.mxu0 %v234
  %605 = vmatprep.subr.mxu0 0.0
  %606 = vmatpush1.msra.mxu0 %v235
  %607 = vmatprep.subr.mxu0 0.0
  %608 = vmatpush1.msra.mxu0 %v236
  %609 = vmatprep.subr.mxu0 0.0
  %610 = vmatpush1.msra.mxu0 %v237
  %611 = vmatprep.subr.mxu0 0.0
  %612 = vmatpush1.msra.mxu0 %v238
  %613 = vmatprep.subr.mxu0 0.0
  %614 = vmatpush1.msra.mxu0 %v239
  %615 = vmatprep.subr.mxu0 0.0
  %616 = vmatpush1.msra.mxu0 %v240
  %617 = vmatprep.subr.mxu0 0.0
  %618 = vmatpush1.msra.mxu0 %v241
  %619 = vmatprep.subr.mxu0 0.0
  %620 = vmatpush1.msra.mxu0 %v242
  %621 = vmatprep.mubr.f32.mxu0 %v14
  %622 = vmatmul.mubr.f32.gmra.mrb[0].mxu0 %v13
  %v623 = vpop.f32.mrb[0].mxu0
  %v624 = vadd.f32 %v499, %v623
  %v625 = vpop.f32.mrb[0].mxu0
  %626 = vmatprep.mubr.f32.mxu0 %v28
  %627 = vmatmul.mubr.f32.gmra.mrb[0].mxu0 %v27
  %v628 = vpop.f32.mrb[0].mxu0
  %v629 = vadd.f32 %v504, %v628
  %v630 = vpop.f32.mrb[0].mxu0
  %631 = vmatprep.mubr.f32.mxu0 %v42
  %632 = vmatmul.mubr.f32.gmra.mrb[0].mxu0 %v41
  %v633 = vpop.f32.mrb[0].mxu0
  %v634 = vadd.f32 %v509, %v633
  %v635 = vpop.f32.mrb[0].mxu0
  %636 = vmatprep.mubr.f32.mxu0 %v56
  %637 = vmatmul.mubr.f32.gmra.mrb[0].mxu0 %v55
  %v638 = vpop.f32.mrb[0].mxu0
  %v639 = vadd.f32 %v514, %v638
  %v640 = vpop.f32.mrb[0].mxu0
  %641 = vmatprep.mubr.f32.mxu0 %v70
  %642 = vmatmul.mubr.f32.gmra.mrb[0].mxu0 %v69
  %v643 = vpop.f32.mrb[0].mxu0
  %v644 = vadd.f32 %v519, %v643
  %v645 = vpop.f32.mrb[0].mxu0
  %646 = vmatprep.mubr.f32.mxu0 %v84
  %647 = vmatmul.mubr.f32.gmra.mrb[0].mxu0 %v83
  %v648 = vpop.f32.mrb[0].mxu0
  %v649 = vadd.f32 %v524, %v648
  %v650 = vpop.f32.mrb[0].mxu0
  %651 = vmatprep.mubr.f32.mxu0 %v98
  %652 = vmatmul.mubr.f32.gmra.mrb[0].mxu0 %v97
  %v653 = vpop.f32.mrb[0].mxu0
  %v654 = vadd.f32 %v529, %v653
  %v655 = vpop.f32.mrb[0].mxu0
  %656 = vmatprep.mubr.f32.mxu0 %v112
  %657 = vmatmul.mubr.f32.gmra.mrb[0].mxu0 %v111
  %v658 = vpop.f32.mrb[0].mxu0
  %v659 = vadd.f32 %v534, %v658
  %v660 = vpop.f32.mrb[0].mxu0
  %661 = vmatprep.mubr.f32.mxu0 %v126
  %662 = vmatmul.mubr.f32.gmra.mrb[0].mxu0 %v125
  %v663 = vpop.f32.mrb[0].mxu0
  %v664 = vadd.f32 %v539, %v663
  %v665 = vpop.f32.mrb[0].mxu0
  %666 = vmatprep.mubr.f32.mxu0 %v140
  %667 = vmatmul.mubr.f32.gmra.mrb[0].mxu0 %v139
  %v668 = vpop.f32.mrb[0].mxu0
  %v669 = vadd.f32 %v544, %v668
  %v670 = vpop.f32.mrb[0].mxu0
  %671 = vmatprep.mubr.f32.mxu0 %v154
  %672 = vmatmul.mubr.f32.gmra.mrb[0].mxu0 %v153
  %v673 = vpop.f32.mrb[0].mxu0
  %v674 = vadd.f32 %v549, %v673
  %v675 = vpop.f32.mrb[0].mxu0
  %676 = vmatprep.mubr.f32.mxu0 %v168
  %677 = vmatmul.mubr.f32.gmra.mrb[0].mxu0 %v167
  %v678 = vpop.f32.mrb[0].mxu0
  %v679 = vadd.f32 %v554, %v678
  %v680 = vpop.f32.mrb[0].mxu0
  %681 = vdwg.mxu0
  %682 = vmatprep.subr.mxu0 0.0
  %683 = vmatpush1.msra.mxu0 %v243
  %684 = vmatprep.subr.mxu0 0.0
  %685 = vmatpush1.msra.mxu0 %v244
  %686 = vmatprep.subr.mxu0 0.0
  %687 = vmatpush1.msra.mxu0 %v245
  %688 = vmatprep.subr.mxu0 0.0
  %689 = vmatpush1.msra.mxu0 %v246
  %690 = vmatprep.subr.mxu0 0.0
  %691 = vmatpush1.msra.mxu0 %v247
  %692 = vmatprep.subr.mxu0 0.0
  %693 = vmatpush1.msra.mxu0 %v248
  %694 = vmatprep.subr.mxu0 0.0
  %695 = vmatpush1.msra.mxu0 %v249
  %696 = vmatprep.subr.mxu0 0.0
  %697 = vmatpush1.msra.mxu0 %v250
  %698 = vmatprep.subr.mxu0 0.0
  %699 = vmatpush1.msra.mxu0 %v251
  %700 = vmatprep.subr.mxu0 0.0
  %701 = vmatpush1.msra.mxu0 %v252
  %702 = vmatprep.subr.mxu0 0.0
  %703 = vmatpush1.msra.mxu0 %v253
  %704 = vmatprep.subr.mxu0 0.0
  %705 = vmatpush1.msra.mxu0 %v254
  %706 = vmatprep.subr.mxu0 0.0
  %707 = vmatpush1.msra.mxu0 %v255
  %708 = vmatprep.subr.mxu0 0.0
  %709 = vmatpush1.msra.mxu0 %v256
  %710 = vmatprep.subr.mxu0 0.0
  %711 = vmatpush1.msra.mxu0 %v257
  %712 = vmatprep.subr.mxu0 0.0
  %713 = vmatpush1.msra.mxu0 %v258
  %714 = vmatprep.subr.mxu0 0.0
  %715 = vmatpush1.msra.mxu0 %v259
  %716 = vmatprep.subr.mxu0 0.0
  %717 = vmatpush1.msra.mxu0 %v260
  %718 = vmatprep.subr.mxu0 0.0
  %719 = vmatpush1.msra.mxu0 %v261
  %720 = vmatprep.subr.mxu0 0.0
  %721 = vmatpush1.msra.mxu0 %v262
  %722 = vmatprep.subr.mxu0 0.0
  %723 = vmatpush1.msra.mxu0 %v263
  %724 = vmatprep.subr.mxu0 0.0
  %725 = vmatpush1.msra.mxu0 %v264
  %726 = vmatprep.subr.mxu0 0.0
  %727 = vmatpush1.msra.mxu0 %v265
  %728 = vmatprep.subr.mxu0 0.0
  %729 = vmatpush1.msra.mxu0 %v266
  %730 = vmatprep.subr.mxu0 0.0
  %731 = vmatpush1.msra.mxu0 %v267
  %732 = vmatprep.subr.mxu0 0.0
  %733 = vmatpush1.msra.mxu0 %v268
  %734 = vmatprep.subr.mxu0 0.0
  %735 = vmatpush1.msra.mxu0 %v269
  %736 = vmatprep.subr.mxu0 0.0
  %737 = vmatpush1.msra.mxu0 %v270
  %738 = vmatprep.subr.mxu0 0.0
  %739 = vmatpush1.msra.mxu0 %v271
  %740 = vmatprep.subr.mxu0 0.0
  %741 = vmatpush1.msra.mxu0 %v272
  %742 = vmatprep.subr.mxu0 0.0
  %743 = vmatpush1.msra.mxu0 %v273
  %744 = vmatprep.subr.mxu0 0.0
  %745 = vmatpush1.msra.mxu0 %v274
  %746 = vmatprep.mubr.f32.mxu0 %v16
  %747 = vmatmul.mubr.f32.gmra.mrb[0].mxu0 %v15
  %v748 = vpop.f32.mrb[0].mxu0
  %v749 = vadd.f32 %v624, %v748
  %v750 = vpop.f32.mrb[0].mxu0
  %751 = vmatprep.mubr.f32.mxu0 %v30
  %752 = vmatmul.mubr.f32.gmra.mrb[0].mxu0 %v29
  %v753 = vpop.f32.mrb[0].mxu0
  %v754 = vadd.f32 %v629, %v753
  %v755 = vpop.f32.mrb[0].mxu0
  %756 = vmatprep.mubr.f32.mxu0 %v44
  %757 = vmatmul.mubr.f32.gmra.mrb[0].mxu0 %v43
  %v758 = vpop.f32.mrb[0].mxu0
  %v759 = vadd.f32 %v634, %v758
  %v760 = vpop.f32.mrb[0].mxu0
  %761 = vmatprep.mubr.f32.mxu0 %v58
  %762 = vmatmul.mubr.f32.gmra.mrb[0].mxu0 %v57
  %v763 = vpop.f32.mrb[0].mxu0
  %v764 = vadd.f32 %v639, %v763
  %v765 = vpop.f32.mrb[0].mxu0
  %766 = vmatprep.mubr.f32.mxu0 %v72
  %767 = vmatmul.mubr.f32.gmra.mrb[0].mxu0 %v71
  %v768 = vpop.f32.mrb[0].mxu0
  %v769 = vadd.f32 %v644, %v768
  %v770 = vpop.f32.mrb[0].mxu0
  %771 = vmatprep.mubr.f32.mxu0 %v86
  %772 = vmatmul.mubr.f32.gmra.mrb[0].mxu0 %v85
  %v773 = vpop.f32.mrb[0].mxu0
  %v774 = vadd.f32 %v649, %v773
  %v775 = vpop.f32.mrb[0].mxu0
  %776 = vmatprep.mubr.f32.mxu0 %v100
  %777 = vmatmul.mubr.f32.gmra.mrb[0].mxu0 %v99
  %v778 = vpop.f32.mrb[0].mxu0
  %v779 = vadd.f32 %v654, %v778
  %v780 = vpop.f32.mrb[0].mxu0
  %781 = vmatprep.mubr.f32.mxu0 %v114
  %782 = vmatmul.mubr.f32.gmra.mrb[0].mxu0 %v113
  %v783 = vpop.f32.mrb[0].mxu0
  %v784 = vadd.f32 %v659, %v783
  %v785 = vpop.f32.mrb[0].mxu0
  %786 = vmatprep.mubr.f32.mxu0 %v128
  %787 = vmatmul.mubr.f32.gmra.mrb[0].mxu0 %v127
  %v788 = vpop.f32.mrb[0].mxu0
  %v789 = vadd.f32 %v664, %v788
  %v790 = vpop.f32.mrb[0].mxu0
  %791 = vmatprep.mubr.f32.mxu0 %v142
  %792 = vmatmul.mubr.f32.gmra.mrb[0].mxu0 %v141
  %v793 = vpop.f32.mrb[0].mxu0
  %v794 = vadd.f32 %v669, %v793
  %v795 = vpop.f32.mrb[0].mxu0
  %796 = vmatprep.mubr.f32.mxu0 %v156
  %797 = vmatmul.mubr.f32.gmra.mrb[0].mxu0 %v155
  %v798 = vpop.f32.mrb[0].mxu0
  %v799 = vadd.f32 %v674, %v798
  %v800 = vpop.f32.mrb[0].mxu0
  %801 = vmatprep.mubr.f32.mxu0 %v170
  %802 = vmatmul.mubr.f32.gmra.mrb[0].mxu0 %v169
  %v803 = vpop.f32.mrb[0].mxu0
  %v804 = vadd.f32 %v679, %v803
  %v805 = vpop.f32.mrb[0].mxu0
  %806 = vdwg.mxu0
  %807 = vmatprep.subr.mxu0 0.0
  %808 = vmatpush1.msra.mxu0 %v275
  %809 = vmatprep.subr.mxu0 0.0
  %810 = vmatpush1.msra.mxu0 %v276
  %811 = vmatprep.subr.mxu0 0.0
  %812 = vmatpush1.msra.mxu0 %v277
  %813 = vmatprep.subr.mxu0 0.0
  %814 = vmatpush1.msra.mxu0 %v278
  %815 = vmatprep.subr.mxu0 0.0
  %816 = vmatpush1.msra.mxu0 %v279
  %817 = vmatprep.subr.mxu0 0.0
  %818 = vmatpush1.msra.mxu0 %v280
  %819 = vmatprep.subr.mxu0 0.0
  %820 = vmatpush1.msra.mxu0 %v281
  %821 = vmatprep.subr.mxu0 0.0
  %822 = vmatpush1.msra.mxu0 %v282
  %823 = vmatprep.subr.mxu0 0.0
  %824 = vmatpush1.msra.mxu0 %v283
  %825 = vmatprep.subr.mxu0 0.0
  %826 = vmatpush1.msra.mxu0 %v284
  %827 = vmatprep.subr.mxu0 0.0
  %828 = vmatpush1.msra.mxu0 %v285
  %829 = vmatprep.subr.mxu0 0.0
  %830 = vmatpush1.msra.mxu0 %v286
  %831 = vmatprep.subr.mxu0 0.0
  %832 = vmatpush1.msra.mxu0 %v287
  %833 = vmatprep.subr.mxu0 0.0
  %834 = vmatpush1.msra.mxu0 %v288
  %835 = vmatprep.subr.mxu0 0.0
  %836 = vmatpush1.msra.mxu0 %v289
  %837 = vmatprep.subr.mxu0 0.0
  %838 = vmatpush1.msra.mxu0 %v290
  %839 = vmatprep.subr.mxu0 0.0
  %840 = vmatpush1.msra.mxu0 %v291
  %841 = vmatprep.subr.mxu0 0.0
  %842 = vmatpush1.msra.mxu0 %v292
  %843 = vmatprep.subr.mxu0 0.0
  %844 = vmatpush1.msra.mxu0 %v293
  %845 = vmatprep.subr.mxu0 0.0
  %846 = vmatpush1.msra.mxu0 %v294
  %847 = vmatprep.subr.mxu0 0.0
  %848 = vmatpush1.msra.mxu0 %v295
  %849 = vmatprep.subr.mxu0 0.0
  %850 = vmatpush1.msra.mxu0 %v296
  %851 = vmatprep.subr.mxu0 0.0
  %852 = vmatpush1.msra.mxu0 %v297
  %853 = vmatprep.subr.mxu0 0.0
  %854 = vmatpush1.msra.mxu0 %v298
  %855 = vmatprep.subr.mxu0 0.0
  %856 = vmatpush1.msra.mxu0 %v299
  %857 = vmatprep.subr.mxu0 0.0
  %858 = vmatpush1.msra.mxu0 %v300
  %859 = vmatprep.subr.mxu0 0.0
  %860 = vmatpush1.msra.mxu0 %v301
  %861 = vmatprep.subr.mxu0 0.0
  %862 = vmatpush1.msra.mxu0 %v302
  %863 = vmatprep.subr.mxu0 0.0
  %864 = vmatpush1.msra.mxu0 %v303
  %865 = vmatprep.subr.mxu0 0.0
  %866 = vmatpush1.msra.mxu0 %v304
  %867 = vmatprep.subr.mxu0 0.0
  %868 = vmatpush1.msra.mxu0 %v305
  %869 = vmatprep.subr.mxu0 0.0
  %870 = vmatpush1.msra.mxu0 %v306
  %871 = vmatprep.mubr.f32.mxu0 %v18
  %872 = vmatmul.mubr.f32.gmra.mrb[0].mxu0 %v17
  %v873 = vpop.f32.mrb[0].mxu0
  %v874 = vadd.f32 %v749, %v873
  %v875 = vpop.f32.mrb[0].mxu0
  %876 = vmatprep.mubr.f32.mxu0 %v32
  %877 = vmatmul.mubr.f32.gmra.mrb[0].mxu0 %v31
  %v878 = vpop.f32.mrb[0].mxu0
  %v879 = vadd.f32 %v754, %v878
  %v880 = vpop.f32.mrb[0].mxu0
  %881 = vmatprep.mubr.f32.mxu0 %v46
  %882 = vmatmul.mubr.f32.gmra.mrb[0].mxu0 %v45
  %v883 = vpop.f32.mrb[0].mxu0
  %v884 = vadd.f32 %v759, %v883
  %v885 = vpop.f32.mrb[0].mxu0
  %886 = vmatprep.mubr.f32.mxu0 %v60
  %887 = vmatmul.mubr.f32.gmra.mrb[0].mxu0 %v59
  %v888 = vpop.f32.mrb[0].mxu0
  %v889 = vadd.f32 %v764, %v888
  %v890 = vpop.f32.mrb[0].mxu0
  %891 = vmatprep.mubr.f32.mxu0 %v74
  %892 = vmatmul.mubr.f32.gmra.mrb[0].mxu0 %v73
  %v893 = vpop.f32.mrb[0].mxu0
  %v894 = vadd.f32 %v769, %v893
  %v895 = vpop.f32.mrb[0].mxu0
  %896 = vmatprep.mubr.f32.mxu0 %v88
  %897 = vmatmul.mubr.f32.gmra.mrb[0].mxu0 %v87
  %v898 = vpop.f32.mrb[0].mxu0
  %v899 = vadd.f32 %v774, %v898
  %v900 = vpop.f32.mrb[0].mxu0
  %901 = vmatprep.mubr.f32.mxu0 %v102
  %902 = vmatmul.mubr.f32.gmra.mrb[0].mxu0 %v101
  %v903 = vpop.f32.mrb[0].mxu0
  %v904 = vadd.f32 %v779, %v903
  %v905 = vpop.f32.mrb[0].mxu0
  %906 = vmatprep.mubr.f32.mxu0 %v116
  %907 = vmatmul.mubr.f32.gmra.mrb[0].mxu0 %v115
  %v908 = vpop.f32.mrb[0].mxu0
  %v909 = vadd.f32 %v784, %v908
  %v910 = vpop.f32.mrb[0].mxu0
  %911 = vmatprep.mubr.f32.mxu0 %v130
  %912 = vmatmul.mubr.f32.gmra.mrb[0].mxu0 %v129
  %v913 = vpop.f32.mrb[0].mxu0
  %v914 = vadd.f32 %v789, %v913
  %v915 = vpop.f32.mrb[0].mxu0
  %916 = vmatprep.mubr.f32.mxu0 %v144
  %917 = vmatmul.mubr.f32.gmra.mrb[0].mxu0 %v143
  %v918 = vpop.f32.mrb[0].mxu0
  %v919 = vadd.f32 %v794, %v918
  %v920 = vpop.f32.mrb[0].mxu0
  %921 = vmatprep.mubr.f32.mxu0 %v158
  %922 = vmatmul.mubr.f32.gmra.mrb[0].mxu0 %v157
  %v923 = vpop.f32.mrb[0].mxu0
  %v924 = vadd.f32 %v799, %v923
  %v925 = vpop.f32.mrb[0].mxu0
  %926 = vmatprep.mubr.f32.mxu0 %v172
  %927 = vmatmul.mubr.f32.gmra.mrb[0].mxu0 %v171
  %v928 = vpop.f32.mrb[0].mxu0
  %v929 = vadd.f32 %v804, %v928
  %v930 = vpop.f32.mrb[0].mxu0
  %931 = vdwg.mxu0
  %932 = vmatprep.subr.mxu0 0.0
  %933 = vmatpush1.msra.mxu0 %v307
  %934 = vmatprep.subr.mxu0 0.0
  %935 = vmatpush1.msra.mxu0 %v308
  %936 = vmatprep.subr.mxu0 0.0
  %937 = vmatpush1.msra.mxu0 %v309
  %938 = vmatprep.subr.mxu0 0.0
  %939 = vmatpush1.msra.mxu0 %v310
  %940 = vmatprep.subr.mxu0 0.0
  %941 = vmatpush1.msra.mxu0 %v311
  %942 = vmatprep.subr.mxu0 0.0
  %943 = vmatpush1.msra.mxu0 %v312
  %944 = vmatprep.subr.mxu0 0.0
  %945 = vmatpush1.msra.mxu0 %v313
  %946 = vmatprep.subr.mxu0 0.0
  %947 = vmatpush1.msra.mxu0 %v314
  %948 = vmatprep.subr.mxu0 0.0
  %949 = vmatpush1.msra.mxu0 %v315
  %950 = vmatprep.subr.mxu0 0.0
  %951 = vmatpush1.msra.mxu0 %v316
  %952 = vmatprep.subr.mxu0 0.0
  %953 = vmatpush1.msra.mxu0 %v317
  %954 = vmatprep.subr.mxu0 0.0
  %955 = vmatpush1.msra.mxu0 %v318
  %956 = vmatprep.subr.mxu0 0.0
  %957 = vmatpush1.msra.mxu0 %v319
  %958 = vmatprep.subr.mxu0 0.0
  %959 = vmatpush1.msra.mxu0 %v320
  %960 = vmatprep.subr.mxu0 0.0
  %961 = vmatpush1.msra.mxu0 %v321
  %962 = vmatprep.subr.mxu0 0.0
  %963 = vmatpush1.msra.mxu0 %v322
  %964 = vmatprep.subr.mxu0 0.0
  %965 = vmatpush1.msra.mxu0 %v323
  %966 = vmatprep.subr.mxu0 0.0
  %967 = vmatpush1.msra.mxu0 %v324
  %968 = vmatprep.subr.mxu0 0.0
  %969 = vmatpush1.msra.mxu0 %v325
  %970 = vmatprep.subr.mxu0 0.0
  %971 = vmatpush1.msra.mxu0 %v326
  %972 = vmatprep.subr.mxu0 0.0
  %973 = vmatpush1.msra.mxu0 %v327
  %974 = vmatprep.subr.mxu0 0.0
  %975 = vmatpush1.msra.mxu0 %v328
  %976 = vmatprep.subr.mxu0 0.0
  %977 = vmatpush1.msra.mxu0 %v329
  %978 = vmatprep.subr.mxu0 0.0
  %979 = vmatpush1.msra.mxu0 %v330
  %980 = vmatprep.subr.mxu0 0.0
  %981 = vmatpush1.msra.mxu0 %v331
  %982 = vmatprep.subr.mxu0 0.0
  %983 = vmatpush1.msra.mxu0 %v332
  %984 = vmatprep.subr.mxu0 0.0
  %985 = vmatpush1.msra.mxu0 %v333
  %986 = vmatprep.subr.mxu0 0.0
  %987 = vmatpush1.msra.mxu0 %v334
  %988 = vmatprep.subr.mxu0 0.0
  %989 = vmatpush1.msra.mxu0 %v335
  %990 = vmatprep.subr.mxu0 0.0
  %991 = vmatpush1.msra.mxu0 %v336
  %992 = vmatprep.subr.mxu0 0.0
  %993 = vmatpush1.msra.mxu0 %v337
  %994 = vmatprep.subr.mxu0 0.0
  %995 = vmatpush1.msra.mxu0 %v338
  %996 = vmatprep.mubr.f32.mxu0 %v20
  %997 = vmatmul.mubr.f32.gmra.mrb[0].mxu0 %v19
  %v998 = vpop.f32.mrb[0].mxu0
  %v999 = vadd.f32 %v874, %v998
  %v1000 = vpop.f32.mrb[0].mxu0
  %1001 = vmatprep.mubr.f32.mxu0 %v34
  %1002 = vmatmul.mubr.f32.gmra.mrb[0].mxu0 %v33
  %v1003 = vpop.f32.mrb[0].mxu0
  %v1004 = vadd.f32 %v879, %v1003
  %v1005 = vpop.f32.mrb[0].mxu0
  %1006 = vmatprep.mubr.f32.mxu0 %v48
  %1007 = vmatmul.mubr.f32.gmra.mrb[0].mxu0 %v47
  %v1008 = vpop.f32.mrb[0].mxu0
  %v1009 = vadd.f32 %v884, %v1008
  %v1010 = vpop.f32.mrb[0].mxu0
  %1011 = vmatprep.mubr.f32.mxu0 %v62
  %1012 = vmatmul.mubr.f32.gmra.mrb[0].mxu0 %v61
  %v1013 = vpop.f32.mrb[0].mxu0
  %v1014 = vadd.f32 %v889, %v1013
  %v1015 = vpop.f32.mrb[0].mxu0
  %1016 = vmatprep.mubr.f32.mxu0 %v76
  %1017 = vmatmul.mubr.f32.gmra.mrb[0].mxu0 %v75
  %v1018 = vpop.f32.mrb[0].mxu0
  %v1019 = vadd.f32 %v894, %v1018
  %v1020 = vpop.f32.mrb[0].mxu0
  %1021 = vmatprep.mubr.f32.mxu0 %v90
  %1022 = vmatmul.mubr.f32.gmra.mrb[0].mxu0 %v89
  %v1023 = vpop.f32.mrb[0].mxu0
  %v1024 = vadd.f32 %v899, %v1023
  %v1025 = vpop.f32.mrb[0].mxu0
  %1026 = vmatprep.mubr.f32.mxu0 %v104
  %1027 = vmatmul.mubr.f32.gmra.mrb[0].mxu0 %v103
  %v1028 = vpop.f32.mrb[0].mxu0
  %v1029 = vadd.f32 %v904, %v1028
  %v1030 = vpop.f32.mrb[0].mxu0
  %1031 = vmatprep.mubr.f32.mxu0 %v118
  %1032 = vmatmul.mubr.f32.gmra.mrb[0].mxu0 %v117
  %v1033 = vpop.f32.mrb[0].mxu0
  %v1034 = vadd.f32 %v909, %v1033
  %v1035 = vpop.f32.mrb[0].mxu0
  %1036 = vmatprep.mubr.f32.mxu0 %v132
  %1037 = vmatmul.mubr.f32.gmra.mrb[0].mxu0 %v131
  %v1038 = vpop.f32.mrb[0].mxu0
  %v1039 = vadd.f32 %v914, %v1038
  %v1040 = vpop.f32.mrb[0].mxu0
  %1041 = vmatprep.mubr.f32.mxu0 %v146
  %1042 = vmatmul.mubr.f32.gmra.mrb[0].mxu0 %v145
  %v1043 = vpop.f32.mrb[0].mxu0
  %v1044 = vadd.f32 %v919, %v1043
  %v1045 = vpop.f32.mrb[0].mxu0
  %1046 = vmatprep.mubr.f32.mxu0 %v160
  %1047 = vmatmul.mubr.f32.gmra.mrb[0].mxu0 %v159
  %v1048 = vpop.f32.mrb[0].mxu0
  %v1049 = vadd.f32 %v924, %v1048
  %v1050 = vpop.f32.mrb[0].mxu0
  %1051 = vmatprep.mubr.f32.mxu0 %v174
  %1052 = vmatmul.mubr.f32.gmra.mrb[0].mxu0 %v173
  %v1053 = vpop.f32.mrb[0].mxu0
  %v1054 = vadd.f32 %v929, %v1053
  %v1055 = vpop.f32.mrb[0].mxu0
  %1056 = vdwg.mxu0
  %1057 = vmatprep.subr.mxu0 0.0
  %1058 = vmatpush1.msra.mxu0 %v339
  %1059 = vmatprep.subr.mxu0 0.0
  %1060 = vmatpush1.msra.mxu0 %v340
  %1061 = vmatprep.subr.mxu0 0.0
  %1062 = vmatpush1.msra.mxu0 %v341
  %1063 = vmatprep.subr.mxu0 0.0
  %1064 = vmatpush1.msra.mxu0 %v342
  %1065 = vmatprep.subr.mxu0 0.0
  %1066 = vmatpush1.msra.mxu0 %v343
  %1067 = vmatprep.subr.mxu0 0.0
  %1068 = vmatpush1.msra.mxu0 %v344
  %1069 = vmatprep.subr.mxu0 0.0
  %1070 = vmatpush1.msra.mxu0 %v345
  %1071 = vmatprep.subr.mxu0 0.0
  %1072 = vmatpush1.msra.mxu0 %v346
  %1073 = vmatprep.subr.mxu0 0.0
  %1074 = vmatpush1.msra.mxu0 %v347
  %1075 = vmatprep.subr.mxu0 0.0
  %1076 = vmatpush1.msra.mxu0 %v348
  %1077 = vmatprep.subr.mxu0 0.0
  %1078 = vmatpush1.msra.mxu0 %v349
  %1079 = vmatprep.subr.mxu0 0.0
  %1080 = vmatpush1.msra.mxu0 %v350
  %1081 = vmatprep.subr.mxu0 0.0
  %1082 = vmatpush1.msra.mxu0 %v351
  %1083 = vmatprep.subr.mxu0 0.0
  %1084 = vmatpush1.msra.mxu0 %v352
  %1085 = vmatprep.subr.mxu0 0.0
  %1086 = vmatpush1.msra.mxu0 %v353
  %1087 = vmatprep.subr.mxu0 0.0
  %1088 = vmatpush1.msra.mxu0 %v354
  %1089 = vmatprep.subr.mxu0 0.0
  %1090 = vmatpush1.msra.mxu0 %v355
  %1091 = vmatprep.subr.mxu0 0.0
  %1092 = vmatpush1.msra.mxu0 %v356
  %1093 = vmatprep.subr.mxu0 0.0
  %1094 = vmatpush1.msra.mxu0 %v357
  %1095 = vmatprep.subr.mxu0 0.0
  %1096 = vmatpush1.msra.mxu0 %v358
  %1097 = vmatprep.subr.mxu0 0.0
  %1098 = vmatpush1.msra.mxu0 %v359
  %1099 = vmatprep.subr.mxu0 0.0
  %1100 = vmatpush1.msra.mxu0 %v360
  %1101 = vmatprep.subr.mxu0 0.0
  %1102 = vmatpush1.msra.mxu0 %v361
  %1103 = vmatprep.subr.mxu0 0.0
  %1104 = vmatpush1.msra.mxu0 %v362
  %1105 = vmatprep.subr.mxu0 0.0
  %1106 = vmatpush1.msra.mxu0 %v363
  %1107 = vmatprep.subr.mxu0 0.0
  %1108 = vmatpush1.msra.mxu0 %v364
  %1109 = vmatprep.subr.mxu0 0.0
  %1110 = vmatpush1.msra.mxu0 %v365
  %1111 = vmatprep.subr.mxu0 0.0
  %1112 = vmatpush1.msra.mxu0 %v366
  %1113 = vmatprep.subr.mxu0 0.0
  %1114 = vmatpush1.msra.mxu0 %v367
  %1115 = vmatprep.subr.mxu0 0.0
  %1116 = vmatpush1.msra.mxu0 %v368
  %1117 = vmatprep.subr.mxu0 0.0
  %1118 = vmatpush1.msra.mxu0 %v369
  %1119 = vmatprep.subr.mxu0 0.0
  %1120 = vmatpush1.msra.mxu0 %v370
  %1121 = vmatprep.mubr.f32.mxu0 %v22
  %1122 = vmatmul.mubr.f32.gmra.mrb[0].mxu0 %v21
  %v1123 = vpop.f32.mrb[0].mxu0
  %v1124 = vadd.f32 %v999, %v1123
  %v1125 = vpop.f32.mrb[0].mxu0
  %1126 = vmatprep.mubr.f32.mxu0 %v36
  %1127 = vmatmul.mubr.f32.gmra.mrb[0].mxu0 %v35
  %v1128 = vpop.f32.mrb[0].mxu0
  %v1129 = vadd.f32 %v1004, %v1128
  %v1130 = vpop.f32.mrb[0].mxu0
  %1131 = vmatprep.mubr.f32.mxu0 %v50
  %1132 = vmatmul.mubr.f32.gmra.mrb[0].mxu0 %v49
  %v1133 = vpop.f32.mrb[0].mxu0
  %v1134 = vadd.f32 %v1009, %v1133
  %v1135 = vpop.f32.mrb[0].mxu0
  %1136 = vmatprep.mubr.f32.mxu0 %v64
  %1137 = vmatmul.mubr.f32.gmra.mrb[0].mxu0 %v63
  %v1138 = vpop.f32.mrb[0].mxu0
  %v1139 = vadd.f32 %v1014, %v1138
  %v1140 = vpop.f32.mrb[0].mxu0
  %1141 = vmatprep.mubr.f32.mxu0 %v78
  %1142 = vmatmul.mubr.f32.gmra.mrb[0].mxu0 %v77
  %v1143 = vpop.f32.mrb[0].mxu0
  %v1144 = vadd.f32 %v1019, %v1143
  %v1145 = vpop.f32.mrb[0].mxu0
  %1146 = vmatprep.mubr.f32.mxu0 %v92
  %1147 = vmatmul.mubr.f32.gmra.mrb[0].mxu0 %v91
  %v1148 = vpop.f32.mrb[0].mxu0
  %v1149 = vadd.f32 %v1024, %v1148
  %v1150 = vpop.f32.mrb[0].mxu0
  %1151 = vmatprep.mubr.f32.mxu0 %v106
  %1152 = vmatmul.mubr.f32.gmra.mrb[0].mxu0 %v105
  %v1153 = vpop.f32.mrb[0].mxu0
  %v1154 = vadd.f32 %v1029, %v1153
  %v1155 = vpop.f32.mrb[0].mxu0
  %1156 = vmatprep.mubr.f32.mxu0 %v120
  %1157 = vmatmul.mubr.f32.gmra.mrb[0].mxu0 %v119
  %v1158 = vpop.f32.mrb[0].mxu0
  %v1159 = vadd.f32 %v1034, %v1158
  %v1160 = vpop.f32.mrb[0].mxu0
  %1161 = vmatprep.mubr.f32.mxu0 %v134
  %1162 = vmatmul.mubr.f32.gmra.mrb[0].mxu0 %v133
  %v1163 = vpop.f32.mrb[0].mxu0
  %v1164 = vadd.f32 %v1039, %v1163
  %v1165 = vpop.f32.mrb[0].mxu0
  %1166 = vmatprep.mubr.f32.mxu0 %v148
  %1167 = vmatmul.mubr.f32.gmra.mrb[0].mxu0 %v147
  %v1168 = vpop.f32.mrb[0].mxu0
  %v1169 = vadd.f32 %v1044, %v1168
  %v1170 = vpop.f32.mrb[0].mxu0
  %1171 = vmatprep.mubr.f32.mxu0 %v162
  %1172 = vmatmul.mubr.f32.gmra.mrb[0].mxu0 %v161
  %v1173 = vpop.f32.mrb[0].mxu0
  %v1174 = vadd.f32 %v1049, %v1173
  %v1175 = vpop.f32.mrb[0].mxu0
  %1176 = vmatprep.mubr.f32.mxu0 %v176
  %1177 = vmatmul.mubr.f32.gmra.mrb[0].mxu0 %v175
  %v1178 = vpop.f32.mrb[0].mxu0
  %v1179 = vadd.f32 %v1054, %v1178
  %v1180 = vpop.f32.mrb[0].mxu0
  %1181 = vdwg.mxu0
  %1182 = vmatprep.subr.mxu0 0.0
  %1183 = vmatpush1.msra.mxu0 %v371
  %1184 = vmatprep.subr.mxu0 0.0
  %1185 = vmatpush1.msra.mxu0 %v372
  %1186 = vmatprep.subr.mxu0 0.0
  %1187 = vmatpush1.msra.mxu0 %v373
  %1188 = vmatprep.subr.mxu0 0.0
  %1189 = vmatpush1.msra.mxu0 %v374
  %1190 = vmatprep.subr.mxu0 0.0
  %1191 = vmatpush1.msra.mxu0 %v375
  %1192 = vmatprep.subr.mxu0 0.0
  %1193 = vmatpush1.msra.mxu0 %v376
  %1194 = vmatprep.subr.mxu0 0.0
  %1195 = vmatpush1.msra.mxu0 %v377
  %1196 = vmatprep.subr.mxu0 0.0
  %1197 = vmatpush1.msra.mxu0 %v378
  %1198 = vmatprep.subr.mxu0 0.0
  %1199 = vmatpush1.msra.mxu0 %v379
  %1200 = vmatprep.subr.mxu0 0.0
  %1201 = vmatpush1.msra.mxu0 %v380
  %1202 = vmatprep.subr.mxu0 0.0
  %1203 = vmatpush1.msra.mxu0 %v381
  %1204 = vmatprep.subr.mxu0 0.0
  %1205 = vmatpush1.msra.mxu0 %v382
  %1206 = vmatprep.subr.mxu0 0.0
  %1207 = vmatpush1.msra.mxu0 %v383
  %1208 = vmatprep.subr.mxu0 0.0
  %1209 = vmatpush1.msra.mxu0 %v384
  %1210 = vmatprep.subr.mxu0 0.0
  %1211 = vmatpush1.msra.mxu0 %v385
  %1212 = vmatprep.subr.mxu0 0.0
  %1213 = vmatpush1.msra.mxu0 %v386
  %1214 = vmatprep.subr.mxu0 0.0
  %1215 = vmatpush1.msra.mxu0 %v387
  %1216 = vmatprep.subr.mxu0 0.0
  %1217 = vmatpush1.msra.mxu0 %v388
  %1218 = vmatprep.subr.mxu0 0.0
  %1219 = vmatpush1.msra.mxu0 %v389
  %1220 = vmatprep.subr.mxu0 0.0
  %1221 = vmatpush1.msra.mxu0 %v390
  %1222 = vmatprep.subr.mxu0 0.0
  %1223 = vmatpush1.msra.mxu0 %v391
  %1224 = vmatprep.subr.mxu0 0.0
  %1225 = vmatpush1.msra.mxu0 %v392
  %1226 = vmatprep.subr.mxu0 0.0
  %1227 = vmatpush1.msra.mxu0 %v393
  %1228 = vmatprep.subr.mxu0 0.0
  %1229 = vmatpush1.msra.mxu0 %v394
  %1230 = vmatprep.subr.mxu0 0.0
  %1231 = vmatpush1.msra.mxu0 0.0
  %1232 = vmatprep.subr.mxu0 0.0
  %1233 = vmatpush1.msra.mxu0 0.0
  %1234 = vmatprep.subr.mxu0 0.0
  %1235 = vmatpush1.msra.mxu0 0.0
  %1236 = vmatprep.subr.mxu0 0.0
  %1237 = vmatpush1.msra.mxu0 0.0
  %1238 = vmatprep.subr.mxu0 0.0
  %1239 = vmatpush1.msra.mxu0 0.0
  %1240 = vmatprep.subr.mxu0 0.0
  %1241 = vmatpush1.msra.mxu0 0.0
  %1242 = vmatprep.subr.mxu0 0.0
  %1243 = vmatpush1.msra.mxu0 0.0
  %1244 = vmatprep.subr.mxu0 0.0
  %1245 = vmatpush1.msra.mxu0 0.0
  %1246 = vmatprep.mubr.f32.mxu0 %v397
  %1247 = vmatmul.mubr.f32.gmra.mrb[0].mxu0 %v23
  %v1248 = vpop.f32.mrb[0].mxu0
  %v1249 = vadd.f32 %v1124, %v1248
  %v1250 = vpop.f32.mrb[0].mxu0
  %1251 = vmatprep.mubr.f32.mxu0 %v400
  %1252 = vmatmul.mubr.f32.gmra.mrb[0].mxu0 %v37
  %v1253 = vpop.f32.mrb[0].mxu0
  %v1254 = vadd.f32 %v1129, %v1253
  %v1255 = vpop.f32.mrb[0].mxu0
  %1256 = vmatprep.mubr.f32.mxu0 %v403
  %1257 = vmatmul.mubr.f32.gmra.mrb[0].mxu0 %v51
  %v1258 = vpop.f32.mrb[0].mxu0
  %v1259 = vadd.f32 %v1134, %v1258
  %v1260 = vpop.f32.mrb[0].mxu0
  %1261 = vmatprep.mubr.f32.mxu0 %v406
  %1262 = vmatmul.mubr.f32.gmra.mrb[0].mxu0 %v65
  %v1263 = vpop.f32.mrb[0].mxu0
  %v1264 = vadd.f32 %v1139, %v1263
  %v1265 = vpop.f32.mrb[0].mxu0
  %1266 = vmatprep.mubr.f32.mxu0 %v409
  %1267 = vmatmul.mubr.f32.gmra.mrb[0].mxu0 %v79
  %v1268 = vpop.f32.mrb[0].mxu0
  %v1269 = vadd.f32 %v1144, %v1268
  %v1270 = vpop.f32.mrb[0].mxu0
  %1271 = vmatprep.mubr.f32.mxu0 %v412
  %1272 = vmatmul.mubr.f32.gmra.mrb[0].mxu0 %v93
  %v1273 = vpop.f32.mrb[0].mxu0
  %v1274 = vadd.f32 %v1149, %v1273
  %v1275 = vpop.f32.mrb[0].mxu0
  %1276 = vmatprep.mubr.f32.mxu0 %v415
  %1277 = vmatmul.mubr.f32.gmra.mrb[0].mxu0 %v107
  %v1278 = vpop.f32.mrb[0].mxu0
  %v1279 = vadd.f32 %v1154, %v1278
  %v1280 = vpop.f32.mrb[0].mxu0
  %1281 = vmatprep.mubr.f32.mxu0 %v418
  %1282 = vmatmul.mubr.f32.gmra.mrb[0].mxu0 %v121
  %v1283 = vpop.f32.mrb[0].mxu0
  %v1284 = vadd.f32 %v1159, %v1283
  %v1285 = vpop.f32.mrb[0].mxu0
  %1286 = vmatprep.mubr.f32.mxu0 %v421
  %1287 = vmatmul.mubr.f32.gmra.mrb[0].mxu0 %v135
  %v1288 = vpop.f32.mrb[0].mxu0
  %v1289 = vadd.f32 %v1164, %v1288
  %v1290 = vpop.f32.mrb[0].mxu0
  %1291 = vmatprep.mubr.f32.mxu0 %v424
  %1292 = vmatmul.mubr.f32.gmra.mrb[0].mxu0 %v149
  %v1293 = vpop.f32.mrb[0].mxu0
  %v1294 = vadd.f32 %v1169, %v1293
  %v1295 = vpop.f32.mrb[0].mxu0
  %1296 = vmatprep.mubr.f32.mxu0 %v427
  %1297 = vmatmul.mubr.f32.gmra.mrb[0].mxu0 %v163
  %v1298 = vpop.f32.mrb[0].mxu0
  %v1299 = vadd.f32 %v1174, %v1298
  %v1300 = vpop.f32.mrb[0].mxu0
  %1301 = vmatprep.mubr.f32.mxu0 %v430
  %1302 = vmatmul.mubr.f32.gmra.mrb[0].mxu0 %v177
  %v1303 = vpop.f32.mrb[0].mxu0
  %v1304 = vadd.f32 %v1179, %v1303
  %v1305 = vpop.f32.mrb[0].mxu0
  %1306 = vdwg.mxu0
  %vm1307 = vcmask 195584
  %1308 = vst.msk [vmem:[%s2] sm:$0xff] %vm1307, %v1249
  %1309 = vst.msk [vmem:[%s2 + $0x8] sm:$0xff] %vm1307, %v1254
  %1310 = vst.msk [vmem:[%s2 + $0x10] sm:$0xff] %vm1307, %v1259
  %1311 = vst.msk [vmem:[%s2 + $0x18] sm:$0xff] %vm1307, %v1264
  %1312 = vst.msk [vmem:[%s2 + $0x20] sm:$0xff] %vm1307, %v1269
  %1313 = vst.msk [vmem:[%s2 + $0x28] sm:$0xff] %vm1307, %v1274
  %1314 = vst.msk [vmem:[%s2 + $0x30] sm:$0xff] %vm1307, %v1279
  %1315 = vst.msk [vmem:[%s2 + $0x38] sm:$0xff] %vm1307, %v1284
  %1316 = vst.msk [vmem:[%s2 + $0x40] sm:$0xff] %vm1307, %v1289
  %1317 = vst.msk [vmem:[%s2 + $0x48] sm:$0xff] %vm1307, %v1294
  %1318 = vst.msk [vmem:[%s2 + $0x50] sm:$0xff] %vm1307, %v1299
  %1319 = vst.msk [vmem:[%s2 + $0x58] sm:$0xff] %vm1307, %v1304
  // Predicated region
  $region10: #{_net_forward_impl.2} parent=0 // pred_check
    _
  $region11: #{_net_forward_impl.2} parent=0 // pred_check_branch
    %1321 = sbr.rel (0) target = $region13
  $region12: #{_net_forward_impl.2} parent=0 // pred_region
    _
  $region13: #{_net_forward_impl.2} parent=0 // pred_fallthru
    _
  // Predicated region
  $region14: #{_net_forward_impl.2} parent=0 // pred_check
    _
  $region15: #{_net_forward_impl.2} parent=0 // pred_check_branch
    %1323 = sbr.rel (0) target = $region17
  $region16: #{_net_forward_impl.2} parent=0 // pred_region
    _
  $region17: #{_net_forward_impl.2} parent=0 // pred_fallthru
    _

// kernel: _net_forward_impl.3
$region0: #{_net_forward_impl.3}
  #allocation0 [shape = 'u32[]', space=smem, size = 0x4, offset = 0x4, fixed_abs, tag = 'smem constant byte address 0x4 - core index']
  #allocation1 [shape = 'u32[144,128]{1,0:T(1,128)}', space=vmem, size = 0x12000, scoped, tag = 'internal scratch']
  %s0 = inlined_call_operand.vmem [shape: f32[2,1152], index: 0, kind: input, shape index: {}]
  %s1 = inlined_call_operand.vmem [shape: f32[1152,120], index: 1, kind: input, shape index: {}]
  %s2 = inlined_call_operand.vmem [shape: f32[1,120], index: 2, kind: input, shape index: {}]
  %s3 = inlined_call_operand.vmem [shape: f32[120,48], index: 3, kind: input, shape index: {}]
  %s4 = inlined_call_operand.vmem [shape: f32[1,48], index: 4, kind: input, shape index: {}]
  %s5 = inlined_call_operand.vmem [shape: f32[48,48], index: 5, kind: input, shape index: {}]
  %s6 = inlined_call_operand.vmem [shape: f32[1,48], index: 6, kind: input, shape index: {}]
  %s7 = inlined_call_operand.vmem [shape: f32[48,48], index: 7, kind: input, shape index: {}]
  %s8 = inlined_call_operand.vmem [shape: f32[1,48], index: 8, kind: input, shape index: {}]
  %s9 = inlined_call_operand.vmem [shape: f32[48,24], index: 9, kind: input, shape index: {}]
  %s10 = inlined_call_operand.vmem [shape: f32[1,24], index: 10, kind: input, shape index: {}]
  %s11 = inlined_call_operand.hbm [shape: f32[2,24], index: 11, kind: output, shape index: {}]
  %s12 = sld [smem:[#allocation0]]
  $region54: #{_net_forward_impl.3} parent=0
    _
  %s14 = ssub.s32 1, %s12
  %s15 = scalar_select 0, %s14, %s12
  $region1: #{_net_forward_impl.3} parent=0
    #allocation2 [shape = 'u8[1024]{0}', space=vmem, size = 0x400, scoped, tag = 'output window, operand 0, single buffered']
    #allocation3 [shape = 's32[1]{0}', space=sflag, size = 0x4, scoped, tag = 'scoped memory for _net_forward_impl.3']
    %16 = vsyncpa [#allocation3], 0
    // Predicated region
    $region2: #{_net_forward_impl.3} parent=1 // pred_check
      _
    $region3: #{_net_forward_impl.3} parent=1 // pred_check_branch
      %18 = sbr.rel (0) target = $region5
    $region4: #{_net_forward_impl.3} parent=1 // pred_region
      _
    $region5: #{_net_forward_impl.3} parent=1 // pred_fallthru
      _
    // Predicated region
    $region6: #{_net_forward_impl.3} parent=1 // pred_check
      _
    $region7: #{_net_forward_impl.3} parent=1 // pred_check_branch
      %20 = sbr.rel (0) target = $region9
    $region8: #{_net_forward_impl.3} parent=1 // pred_region
      _
    $region9: #{_net_forward_impl.3} parent=1 // pred_fallthru
      _
    // Predicated region
    $region10: #{_net_forward_impl.3} parent=1 // pred_check
      _
    $region11: #{_net_forward_impl.3} parent=1 // pred_check_branch
      %22 = sbr.rel (0) target = $region13
    $region12: #{_net_forward_impl.3} parent=1 // pred_region
      _
    $region13: #{_net_forward_impl.3} parent=1 // pred_fallthru
      _
    // Predicated region
    $region14: #{_net_forward_impl.3} parent=1 // pred_check
      _
    $region15: #{_net_forward_impl.3} parent=1 // pred_check_branch
      %24 = sbr.rel (0) target = $region17
    $region16: #{_net_forward_impl.3} parent=1 // pred_region
      _
    $region17: #{_net_forward_impl.3} parent=1 // pred_fallthru
      _
    // Predicated region
    $region18: #{_net_forward_impl.3} parent=1 // pred_check
      _
    $region19: #{_net_forward_impl.3} parent=1 // pred_check_branch
      %26 = sbr.rel (0) target = $region21
    $region20: #{_net_forward_impl.3} parent=1 // pred_region
      _
    $region21: #{_net_forward_impl.3} parent=1 // pred_fallthru
      _
    // Predicated region
    $region22: #{_net_forward_impl.3} parent=1 // pred_check
      _
    $region23: #{_net_forward_impl.3} parent=1 // pred_check_branch
      %28 = sbr.rel (0) target = $region25
    $region24: #{_net_forward_impl.3} parent=1 // pred_region
      _
    $region25: #{_net_forward_impl.3} parent=1 // pred_fallthru
      _
    // Predicated region
    $region26: #{_net_forward_impl.3} parent=1 // pred_check
      _
    $region27: #{_net_forward_impl.3} parent=1 // pred_check_branch
      %30 = sbr.rel (0) target = $region29
    $region28: #{_net_forward_impl.3} parent=1 // pred_region
      _
    $region29: #{_net_forward_impl.3} parent=1 // pred_fallthru
      _
    // Predicated region
    $region30: #{_net_forward_impl.3} parent=1 // pred_check
      _
    $region31: #{_net_forward_impl.3} parent=1 // pred_check_branch
      %32 = sbr.rel (0) target = $region33
    $region32: #{_net_forward_impl.3} parent=1 // pred_region
      _
    $region33: #{_net_forward_impl.3} parent=1 // pred_fallthru
      _
    // Predicated region
    $region34: #{_net_forward_impl.3} parent=1 // pred_check
      _
    $region35: #{_net_forward_impl.3} parent=1 // pred_check_branch
      %34 = sbr.rel (0) target = $region37
    $region36: #{_net_forward_impl.3} parent=1 // pred_region
      _
    $region37: #{_net_forward_impl.3} parent=1 // pred_fallthru
      _
    // Predicated region
    $region38: #{_net_forward_impl.3} parent=1 // pred_check
      _
    $region39: #{_net_forward_impl.3} parent=1 // pred_check_branch
      %36 = sbr.rel (0) target = $region41
    $region40: #{_net_forward_impl.3} parent=1 // pred_region
      _
    $region41: #{_net_forward_impl.3} parent=1 // pred_fallthru
      _
    // Predicated region
    $region42: #{_net_forward_impl.3} parent=1 // pred_check
      _
    $region43: #{_net_forward_impl.3} parent=1 // pred_check_branch
      %38 = sbr.rel (0) target = $region45
    $region44: #{_net_forward_impl.3} parent=1 // pred_region
      _
    $region45: #{_net_forward_impl.3} parent=1 // pred_fallthru
      _
    %v39 = vld [vmem:[%s0] sm:$0xff]
    %v40 = vld [vmem:[%s0 + $0x8] sm:$0xff]
    %v41 = vld [vmem:[%s0 + $0x10] sm:$0x3]
    %v42 = vld [vmem:[%s1] sm:$0xff]
    %v43 = vld [vmem:[%s1 + $0x8] sm:$0xff]
    %v44 = vld [vmem:[%s1 + $0x10] sm:$0xff]
    %v45 = vld [vmem:[%s1 + $0x18] sm:$0xff]
    %v46 = vld [vmem:[%s1 + $0x20] sm:$0xff]
    %v47 = vld [vmem:[%s1 + $0x28] sm:$0xff]
    %v48 = vld [vmem:[%s1 + $0x30] sm:$0xff]
    %v49 = vld [vmem:[%s1 + $0x38] sm:$0xff]
    %v50 = vld [vmem:[%s1 + $0x40] sm:$0xff]
    %v51 = vld [vmem:[%s1 + $0x48] sm:$0xff]
    %v52 = vld [vmem:[%s1 + $0x50] sm:$0xff]
    %v53 = vld [vmem:[%s1 + $0x58] sm:$0xff]
    %v54 = vld [vmem:[%s1 + $0x60] sm:$0xff]
    %v55 = vld [vmem:[%s1 + $0x68] sm:$0xff]
    %v56 = vld [vmem:[%s1 + $0x70] sm:$0xff]
    %v57 = vld [vmem:[%s1 + $0x78] sm:$0xff]
    %v58 = vld [vmem:[%s1 + $0x80] sm:$0xff]
    %v59 = vld [vmem:[%s1 + $0x88] sm:$0xff]
    %v60 = vld [vmem:[%s1 + $0x90] sm:$0xff]
    %v61 = vld [vmem:[%s1 + $0x98] sm:$0xff]
    %v62 = vld [vmem:[%s1 + $0xa0] sm:$0xff]
    %v63 = vld [vmem:[%s1 + $0xa8] sm:$0xff]
    %v64 = vld [vmem:[%s1 + $0xb0] sm:$0xff]
    %v65 = vld [vmem:[%s1 + $0xb8] sm:$0xff]
    %v66 = vld [vmem:[%s1 + $0xc0] sm:$0xff]
    %v67 = vld [vmem:[%s1 + $0xc8] sm:$0xff]
    %v68 = vld [vmem:[%s1 + $0xd0] sm:$0xff]
    %v69 = vld [vmem:[%s1 + $0xd8] sm:$0xff]
    %v70 = vld [vmem:[%s1 + $0xe0] sm:$0xff]
    %v71 = vld [vmem:[%s1 + $0xe8] sm:$0xff]
    %v72 = vld [vmem:[%s1 + $0xf0] sm:$0xff]
    %v73 = vld [vmem:[%s1 + $0xf8] sm:$0xff]
    %v74 = vld [vmem:[%s1 + $0x100] sm:$0xff]
    %v75 = vld [vmem:[%s1 + $0x108] sm:$0xff]
    %v76 = vld [vmem:[%s1 + $0x110] sm:$0xff]
    %v77 = vld [vmem:[%s1 + $0x118] sm:$0xff]
    %v78 = vld [vmem:[%s1 + $0x120] sm:$0xff]
    %v79 = vld [vmem:[%s1 + $0x128] sm:$0xff]
    %v80 = vld [vmem:[%s1 + $0x130] sm:$0xff]
    %v81 = vld [vmem:[%s1 + $0x138] sm:$0xff]
    %v82 = vld [vmem:[%s1 + $0x140] sm:$0xff]
    %v83 = vld [vmem:[%s1 + $0x148] sm:$0xff]
    %v84 = vld [vmem:[%s1 + $0x150] sm:$0xff]
    %v85 = vld [vmem:[%s1 + $0x158] sm:$0xff]
    %v86 = vld [vmem:[%s1 + $0x160] sm:$0xff]
    %v87 = vld [vmem:[%s1 + $0x168] sm:$0xff]
    %v88 = vld [vmem:[%s1 + $0x170] sm:$0xff]
    %v89 = vld [vmem:[%s1 + $0x178] sm:$0xff]
    %v90 = vld [vmem:[%s1 + $0x180] sm:$0xff]
    %v91 = vld [vmem:[%s1 + $0x188] sm:$0xff]
    %v92 = vld [vmem:[%s1 + $0x190] sm:$0xff]
    %v93 = vld [vmem:[%s1 + $0x198] sm:$0xff]
    %v94 = vld [vmem:[%s1 + $0x1a0] sm:$0xff]
    %v95 = vld [vmem:[%s1 + $0x1a8] sm:$0xff]
    %v96 = vld [vmem:[%s1 + $0x1b0] sm:$0xff]
    %v97 = vld [vmem:[%s1 + $0x1b8] sm:$0xff]
    %v98 = vld [vmem:[%s1 + $0x1c0] sm:$0xff]
    %v99 = vld [vmem:[%s1 + $0x1c8] sm:$0xff]
    %v100 = vld [vmem:[%s1 + $0x1d0] sm:$0xff]
    %v101 = vld [vmem:[%s1 + $0x1d8] sm:$0xff]
    %v102 = vld [vmem:[%s1 + $0x1e0] sm:$0xff]
    %v103 = vld [vmem:[%s1 + $0x1e8] sm:$0xff]
    %v104 = vld [vmem:[%s1 + $0x1f0] sm:$0xff]
    %v105 = vld [vmem:[%s1 + $0x1f8] sm:$0xff]
    %v106 = vld [vmem:[%s1 + $0x200] sm:$0xff]
    %v107 = vld [vmem:[%s1 + $0x208] sm:$0xff]
    %v108 = vld [vmem:[%s1 + $0x210] sm:$0xff]
    %v109 = vld [vmem:[%s1 + $0x218] sm:$0xff]
    %v110 = vld [vmem:[%s1 + $0x220] sm:$0xff]
    %v111 = vld [vmem:[%s1 + $0x228] sm:$0xff]
    %v112 = vld [vmem:[%s1 + $0x230] sm:$0xff]
    %v113 = vld [vmem:[%s1 + $0x238] sm:$0xff]
    %v114 = vld [vmem:[%s1 + $0x240] sm:$0xff]
    %v115 = vld [vmem:[%s1 + $0x248] sm:$0xff]
    %v116 = vld [vmem:[%s1 + $0x250] sm:$0xff]
    %v117 = vld [vmem:[%s1 + $0x258] sm:$0xff]
    %v118 = vld [vmem:[%s1 + $0x260] sm:$0xff]
    %v119 = vld [vmem:[%s1 + $0x268] sm:$0xff]
    %v120 = vld [vmem:[%s1 + $0x270] sm:$0xff]
    %v121 = vld [vmem:[%s1 + $0x278] sm:$0xff]
    %v122 = vld [vmem:[%s1 + $0x280] sm:$0xff]
    %v123 = vld [vmem:[%s1 + $0x288] sm:$0xff]
    %v124 = vld [vmem:[%s1 + $0x290] sm:$0xff]
    %v125 = vld [vmem:[%s1 + $0x298] sm:$0xff]
    %v126 = vld [vmem:[%s1 + $0x2a0] sm:$0xff]
    %v127 = vld [vmem:[%s1 + $0x2a8] sm:$0xff]
    %v128 = vld [vmem:[%s1 + $0x2b0] sm:$0xff]
    %v129 = vld [vmem:[%s1 + $0x2b8] sm:$0xff]
    %v130 = vld [vmem:[%s1 + $0x2c0] sm:$0xff]
    %v131 = vld [vmem:[%s1 + $0x2c8] sm:$0xff]
    %v132 = vld [vmem:[%s1 + $0x2d0] sm:$0xff]
    %v133 = vld [vmem:[%s1 + $0x2d8] sm:$0xff]
    %v134 = vld [vmem:[%s1 + $0x2e0] sm:$0xff]
    %v135 = vld [vmem:[%s1 + $0x2e8] sm:$0xff]
    %v136 = vld [vmem:[%s1 + $0x2f0] sm:$0xff]
    %v137 = vld [vmem:[%s1 + $0x2f8] sm:$0xff]
    %v138 = vld [vmem:[%s1 + $0x300] sm:$0xff]
    %v139 = vld [vmem:[%s1 + $0x308] sm:$0xff]
    %v140 = vld [vmem:[%s1 + $0x310] sm:$0xff]
    %v141 = vld [vmem:[%s1 + $0x318] sm:$0xff]
    %v142 = vld [vmem:[%s1 + $0x320] sm:$0xff]
    %v143 = vld [vmem:[%s1 + $0x328] sm:$0xff]
    %v144 = vld [vmem:[%s1 + $0x330] sm:$0xff]
    %v145 = vld [vmem:[%s1 + $0x338] sm:$0xff]
    %v146 = vld [vmem:[%s1 + $0x340] sm:$0xff]
    %v147 = vld [vmem:[%s1 + $0x348] sm:$0xff]
    %v148 = vld [vmem:[%s1 + $0x350] sm:$0xff]
    %v149 = vld [vmem:[%s1 + $0x358] sm:$0xff]
    %v150 = vld [vmem:[%s1 + $0x360] sm:$0xff]
    %v151 = vld [vmem:[%s1 + $0x368] sm:$0xff]
    %v152 = vld [vmem:[%s1 + $0x370] sm:$0xff]
    %v153 = vld [vmem:[%s1 + $0x378] sm:$0xff]
    %v154 = vld [vmem:[%s1 + $0x380] sm:$0xff]
    %v155 = vld [vmem:[%s1 + $0x388] sm:$0xff]
    %v156 = vld [vmem:[%s1 + $0x390] sm:$0xff]
    %v157 = vld [vmem:[%s1 + $0x398] sm:$0xff]
    %v158 = vld [vmem:[%s1 + $0x3a0] sm:$0xff]
    %v159 = vld [vmem:[%s1 + $0x3a8] sm:$0xff]
    %v160 = vld [vmem:[%s1 + $0x3b0] sm:$0xff]
    %v161 = vld [vmem:[%s1 + $0x3b8] sm:$0xff]
    %v162 = vld [vmem:[%s1 + $0x3c0] sm:$0xff]
    %v163 = vld [vmem:[%s1 + $0x3c8] sm:$0xff]
    %v164 = vld [vmem:[%s1 + $0x3d0] sm:$0xff]
    %v165 = vld [vmem:[%s1 + $0x3d8] sm:$0xff]
    %v166 = vld [vmem:[%s1 + $0x3e0] sm:$0xff]
    %v167 = vld [vmem:[%s1 + $0x3e8] sm:$0xff]
    %v168 = vld [vmem:[%s1 + $0x3f0] sm:$0xff]
    %v169 = vld [vmem:[%s1 + $0x3f8] sm:$0xff]
    %v170 = vld [vmem:[%s1 + $0x400] sm:$0xff]
    %v171 = vld [vmem:[%s1 + $0x408] sm:$0xff]
    %v172 = vld [vmem:[%s1 + $0x410] sm:$0xff]
    %v173 = vld [vmem:[%s1 + $0x418] sm:$0xff]
    %v174 = vld [vmem:[%s1 + $0x420] sm:$0xff]
    %v175 = vld [vmem:[%s1 + $0x428] sm:$0xff]
    %v176 = vld [vmem:[%s1 + $0x430] sm:$0xff]
    %v177 = vld [vmem:[%s1 + $0x438] sm:$0xff]
    %v178 = vld [vmem:[%s1 + $0x440] sm:$0xff]
    %v179 = vld [vmem:[%s1 + $0x448] sm:$0xff]
    %v180 = vld [vmem:[%s1 + $0x450] sm:$0xff]
    %v181 = vld [vmem:[%s1 + $0x458] sm:$0xff]
    %v182 = vld [vmem:[%s1 + $0x460] sm:$0xff]
    %v183 = vld [vmem:[%s1 + $0x468] sm:$0xff]
    %v184 = vld [vmem:[%s1 + $0x470] sm:$0xff]
    %v185 = vld [vmem:[%s1 + $0x478] sm:$0xff]
    %v186 = vld [vmem:[%s2] sm:$0x1]
    %v188 = vlaneseq
    %v189 = vshrl.u32 %v188, 7
    %v190 = vsub.s32 0, %v189
    %v191 = vrot.slane %v186, %v190
    %v196 = vcombine.high %v39, %v39
    %v198 = vunpack.c.l.s4 1983009808
    %v199 = vunpack.c.0.s8 %v198
    %v200 = vlaneseq
    %v201 = vshrl.u32 %v200, 7
    %v202 = vsub.s32 %v199, %v201
    %v203 = vrot.slane %v39, %v202
    %v205 = vunpack.c.l.s4 1983009808
    %v206 = vunpack.c.0.s8 %v205
    %v207 = vlaneseq
    %v208 = vshrl.u32 %v207, 7
    %v209 = vsub.s32 %v206, %v208
    %v210 = vrot.slane %v196, %v209
    %v211 = vcombine.high %v203, %v203
    %v212 = vcombine.high %v210, %v210
    %v213 = vcombine.high %v40, %v40
    %v215 = vunpack.c.l.s4 1983009808
    %v216 = vunpack.c.0.s8 %v215
    %v217 = vlaneseq
    %v218 = vshrl.u32 %v217, 7
    %v219 = vsub.s32 %v216, %v218
    %v220 = vrot.slane %v40, %v219
    %v222 = vunpack.c.l.s4 1983009808
    %v223 = vunpack.c.0.s8 %v222
    %v224 = vlaneseq
    %v225 = vshrl.u32 %v224, 7
    %v226 = vsub.s32 %v223, %v225
    %v227 = vrot.slane %v213, %v226
    %v228 = vcombine.high %v220, %v220
    %v229 = vcombine.high %v227, %v227
    %v231 = vunpack.c.l.s4 1983009808
    %v232 = vunpack.c.0.s8 %v231
    %v233 = vlaneseq
    %v234 = vshrl.u32 %v233, 7
    %v235 = vsub.s32 %v232, %v234
    %v236 = vrot.slane %v41, %v235
    %246 = vmatprep.subr.mxu0 0.0
    %247 = vmatpush1.msra.mxu0 %v42
    %248 = vmatprep.subr.mxu0 0.0
    %249 = vmatpush1.msra.mxu0 %v43
    %250 = vmatprep.subr.mxu0 0.0
    %251 = vmatpush1.msra.mxu0 %v44
    %252 = vmatprep.subr.mxu0 0.0
    %253 = vmatpush1.msra.mxu0 %v45
    %254 = vmatprep.subr.mxu0 0.0
    %255 = vmatpush1.msra.mxu0 %v46
    %256 = vmatprep.subr.mxu0 0.0
    %257 = vmatpush1.msra.mxu0 %v47
    %258 = vmatprep.subr.mxu0 0.0
    %259 = vmatpush1.msra.mxu0 %v48
    %260 = vmatprep.subr.mxu0 0.0
    %261 = vmatpush1.msra.mxu0 %v49
    %262 = vmatprep.subr.mxu0 0.0
    %263 = vmatpush1.msra.mxu0 %v50
    %264 = vmatprep.subr.mxu0 0.0
    %265 = vmatpush1.msra.mxu0 %v51
    %266 = vmatprep.subr.mxu0 0.0
    %267 = vmatpush1.msra.mxu0 %v52
    %268 = vmatprep.subr.mxu0 0.0
    %269 = vmatpush1.msra.mxu0 %v53
    %270 = vmatprep.subr.mxu0 0.0
    %271 = vmatpush1.msra.mxu0 %v54
    %272 = vmatprep.subr.mxu0 0.0
    %273 = vmatpush1.msra.mxu0 %v55
    %274 = vmatprep.subr.mxu0 0.0
    %275 = vmatpush1.msra.mxu0 %v56
    %276 = vmatprep.subr.mxu0 0.0
    %277 = vmatpush1.msra.mxu0 %v57
    %278 = vmatprep.subr.mxu0 0.0
    %279 = vmatpush1.msra.mxu0 %v58
    %280 = vmatprep.subr.mxu0 0.0
    %281 = vmatpush1.msra.mxu0 %v59
    %282 = vmatprep.subr.mxu0 0.0
    %283 = vmatpush1.msra.mxu0 %v60
    %284 = vmatprep.subr.mxu0 0.0
    %285 = vmatpush1.msra.mxu0 %v61
    %286 = vmatprep.subr.mxu0 0.0
    %287 = vmatpush1.msra.mxu0 %v62
    %288 = vmatprep.subr.mxu0 0.0
    %289 = vmatpush1.msra.mxu0 %v63
    %290 = vmatprep.subr.mxu0 0.0
    %291 = vmatpush1.msra.mxu0 %v64
    %292 = vmatprep.subr.mxu0 0.0
    %293 = vmatpush1.msra.mxu0 %v65
    %294 = vmatprep.subr.mxu0 0.0
    %295 = vmatpush1.msra.mxu0 %v66
    %296 = vmatprep.subr.mxu0 0.0
    %297 = vmatpush1.msra.mxu0 %v67
    %298 = vmatprep.subr.mxu0 0.0
    %299 = vmatpush1.msra.mxu0 %v68
    %300 = vmatprep.subr.mxu0 0.0
    %301 = vmatpush1.msra.mxu0 %v69
    %302 = vmatprep.subr.mxu0 0.0
    %303 = vmatpush1.msra.mxu0 %v70
    %304 = vmatprep.subr.mxu0 0.0
    %305 = vmatpush1.msra.mxu0 %v71
    %306 = vmatprep.subr.mxu0 0.0
    %307 = vmatpush1.msra.mxu0 %v72
    %308 = vmatprep.subr.mxu0 0.0
    %309 = vmatpush1.msra.mxu0 %v73
    %310 = vmatprep.mubr.f32.mxu0 %v211
    %311 = vmatmul.mubr.f32.gmra.mrb[0].mxu0 %v203
    %v312 = vpop.f32.mrb[0].mxu0
    %v313 = vadd.f32 %v191, %v312
    %v314 = vpop.f32.mrb[0].mxu0
    %315 = vdwg.mxu0
    %316 = vmatprep.subr.mxu0 0.0
    %317 = vmatpush1.msra.mxu0 %v74
    %318 = vmatprep.subr.mxu0 0.0
    %319 = vmatpush1.msra.mxu0 %v75
    %320 = vmatprep.subr.mxu0 0.0
    %321 = vmatpush1.msra.mxu0 %v76
    %322 = vmatprep.subr.mxu0 0.0
    %323 = vmatpush1.msra.mxu0 %v77
    %324 = vmatprep.subr.mxu0 0.0
    %325 = vmatpush1.msra.mxu0 %v78
    %326 = vmatprep.subr.mxu0 0.0
    %327 = vmatpush1.msra.mxu0 %v79
    %328 = vmatprep.subr.mxu0 0.0
    %329 = vmatpush1.msra.mxu0 %v80
    %330 = vmatprep.subr.mxu0 0.0
    %331 = vmatpush1.msra.mxu0 %v81
    %332 = vmatprep.subr.mxu0 0.0
    %333 = vmatpush1.msra.mxu0 %v82
    %334 = vmatprep.subr.mxu0 0.0
    %335 = vmatpush1.msra.mxu0 %v83
    %336 = vmatprep.subr.mxu0 0.0
    %337 = vmatpush1.msra.mxu0 %v84
    %338 = vmatprep.subr.mxu0 0.0
    %339 = vmatpush1.msra.mxu0 %v85
    %340 = vmatprep.subr.mxu0 0.0
    %341 = vmatpush1.msra.mxu0 %v86
    %342 = vmatprep.subr.mxu0 0.0
    %343 = vmatpush1.msra.mxu0 %v87
    %344 = vmatprep.subr.mxu0 0.0
    %345 = vmatpush1.msra.mxu0 %v88
    %346 = vmatprep.subr.mxu0 0.0
    %347 = vmatpush1.msra.mxu0 %v89
    %348 = vmatprep.subr.mxu0 0.0
    %349 = vmatpush1.msra.mxu0 %v90
    %350 = vmatprep.subr.mxu0 0.0
    %351 = vmatpush1.msra.mxu0 %v91
    %352 = vmatprep.subr.mxu0 0.0
    %353 = vmatpush1.msra.mxu0 %v92
    %354 = vmatprep.subr.mxu0 0.0
    %355 = vmatpush1.msra.mxu0 %v93
    %356 = vmatprep.subr.mxu0 0.0
    %357 = vmatpush1.msra.mxu0 %v94
    %358 = vmatprep.subr.mxu0 0.0
    %359 = vmatpush1.msra.mxu0 %v95
    %360 = vmatprep.subr.mxu0 0.0
    %361 = vmatpush1.msra.mxu0 %v96
    %362 = vmatprep.subr.mxu0 0.0
    %363 = vmatpush1.msra.mxu0 %v97
    %364 = vmatprep.subr.mxu0 0.0
    %365 = vmatpush1.msra.mxu0 %v98
    %366 = vmatprep.subr.mxu0 0.0
    %367 = vmatpush1.msra.mxu0 %v99
    %368 = vmatprep.subr.mxu0 0.0
    %369 = vmatpush1.msra.mxu0 %v100
    %370 = vmatprep.subr.mxu0 0.0
    %371 = vmatpush1.msra.mxu0 %v101
    %372 = vmatprep.subr.mxu0 0.0
    %373 = vmatpush1.msra.mxu0 %v102
    %374 = vmatprep.subr.mxu0 0.0
    %375 = vmatpush1.msra.mxu0 %v103
    %376 = vmatprep.subr.mxu0 0.0
    %377 = vmatpush1.msra.mxu0 %v104
    %378 = vmatprep.subr.mxu0 0.0
    %379 = vmatpush1.msra.mxu0 %v105
    %380 = vmatprep.mubr.f32.mxu0 %v212
    %381 = vmatmul.mubr.f32.gmra.mrb[0].mxu0 %v210
    %v382 = vpop.f32.mrb[0].mxu0
    %v383 = vadd.f32 %v313, %v382
    %v384 = vpop.f32.mrb[0].mxu0
    %385 = vdwg.mxu0
    %386 = vmatprep.subr.mxu0 0.0
    %387 = vmatpush1.msra.mxu0 %v106
    %388 = vmatprep.subr.mxu0 0.0
    %389 = vmatpush1.msra.mxu0 %v107
    %390 = vmatprep.subr.mxu0 0.0
    %391 = vmatpush1.msra.mxu0 %v108
    %392 = vmatprep.subr.mxu0 0.0
    %393 = vmatpush1.msra.mxu0 %v109
    %394 = vmatprep.subr.mxu0 0.0
    %395 = vmatpush1.msra.mxu0 %v110
    %396 = vmatprep.subr.mxu0 0.0
    %397 = vmatpush1.msra.mxu0 %v111
    %398 = vmatprep.subr.mxu0 0.0
    %399 = vmatpush1.msra.mxu0 %v112
    %400 = vmatprep.subr.mxu0 0.0
    %401 = vmatpush1.msra.mxu0 %v113
    %402 = vmatprep.subr.mxu0 0.0
    %403 = vmatpush1.msra.mxu0 %v114
    %404 = vmatprep.subr.mxu0 0.0
    %405 = vmatpush1.msra.mxu0 %v115
    %406 = vmatprep.subr.mxu0 0.0
    %407 = vmatpush1.msra.mxu0 %v116
    %408 = vmatprep.subr.mxu0 0.0
    %409 = vmatpush1.msra.mxu0 %v117
    %410 = vmatprep.subr.mxu0 0.0
    %411 = vmatpush1.msra.mxu0 %v118
    %412 = vmatprep.subr.mxu0 0.0
    %413 = vmatpush1.msra.mxu0 %v119
    %414 = vmatprep.subr.mxu0 0.0
    %415 = vmatpush1.msra.mxu0 %v120
    %416 = vmatprep.subr.mxu0 0.0
    %417 = vmatpush1.msra.mxu0 %v121
    %418 = vmatprep.subr.mxu0 0.0
    %419 = vmatpush1.msra.mxu0 %v122
    %420 = vmatprep.subr.mxu0 0.0
    %421 = vmatpush1.msra.mxu0 %v123
    %422 = vmatprep.subr.mxu0 0.0
    %423 = vmatpush1.msra.mxu0 %v124
    %424 = vmatprep.subr.mxu0 0.0
    %425 = vmatpush1.msra.mxu0 %v125
    %426 = vmatprep.subr.mxu0 0.0
    %427 = vmatpush1.msra.mxu0 %v126
    %428 = vmatprep.subr.mxu0 0.0
    %429 = vmatpush1.msra.mxu0 %v127
    %430 = vmatprep.subr.mxu0 0.0
    %431 = vmatpush1.msra.mxu0 %v128
    %432 = vmatprep.subr.mxu0 0.0
    %433 = vmatpush1.msra.mxu0 %v129
    %434 = vmatprep.subr.mxu0 0.0
    %435 = vmatpush1.msra.mxu0 %v130
    %436 = vmatprep.subr.mxu0 0.0
    %437 = vmatpush1.msra.mxu0 %v131
    %438 = vmatprep.subr.mxu0 0.0
    %439 = vmatpush1.msra.mxu0 %v132
    %440 = vmatprep.subr.mxu0 0.0
    %441 = vmatpush1.msra.mxu0 %v133
    %442 = vmatprep.subr.mxu0 0.0
    %443 = vmatpush1.msra.mxu0 %v134
    %444 = vmatprep.subr.mxu0 0.0
    %445 = vmatpush1.msra.mxu0 %v135
    %446 = vmatprep.subr.mxu0 0.0
    %447 = vmatpush1.msra.mxu0 %v136
    %448 = vmatprep.subr.mxu0 0.0
    %449 = vmatpush1.msra.mxu0 %v137
    %450 = vmatprep.mubr.f32.mxu0 %v228
    %451 = vmatmul.mubr.f32.gmra.mrb[0].mxu0 %v220
    %v452 = vpop.f32.mrb[0].mxu0
    %v453 = vadd.f32 %v383, %v452
    %v454 = vpop.f32.mrb[0].mxu0
    %455 = vdwg.mxu0
    %456 = vmatprep.subr.mxu0 0.0
    %457 = vmatpush1.msra.mxu0 %v138
    %458 = vmatprep.subr.mxu0 0.0
    %459 = vmatpush1.msra.mxu0 %v139
    %460 = vmatprep.subr.mxu0 0.0
    %461 = vmatpush1.msra.mxu0 %v140
    %462 = vmatprep.subr.mxu0 0.0
    %463 = vmatpush1.msra.mxu0 %v141
    %464 = vmatprep.subr.mxu0 0.0
    %465 = vmatpush1.msra.mxu0 %v142
    %466 = vmatprep.subr.mxu0 0.0
    %467 = vmatpush1.msra.mxu0 %v143
    %468 = vmatprep.subr.mxu0 0.0
    %469 = vmatpush1.msra.mxu0 %v144
    %470 = vmatprep.subr.mxu0 0.0
    %471 = vmatpush1.msra.mxu0 %v145
    %472 = vmatprep.subr.mxu0 0.0
    %473 = vmatpush1.msra.mxu0 %v146
    %474 = vmatprep.subr.mxu0 0.0
    %475 = vmatpush1.msra.mxu0 %v147
    %476 = vmatprep.subr.mxu0 0.0
    %477 = vmatpush1.msra.mxu0 %v148
    %478 = vmatprep.subr.mxu0 0.0
    %479 = vmatpush1.msra.mxu0 %v149
    %480 = vmatprep.subr.mxu0 0.0
    %481 = vmatpush1.msra.mxu0 %v150
    %482 = vmatprep.subr.mxu0 0.0
    %483 = vmatpush1.msra.mxu0 %v151
    %484 = vmatprep.subr.mxu0 0.0
    %485 = vmatpush1.msra.mxu0 %v152
    %486 = vmatprep.subr.mxu0 0.0
    %487 = vmatpush1.msra.mxu0 %v153
    %488 = vmatprep.subr.mxu0 0.0
    %489 = vmatpush1.msra.mxu0 %v154
    %490 = vmatprep.subr.mxu0 0.0
    %491 = vmatpush1.msra.mxu0 %v155
    %492 = vmatprep.subr.mxu0 0.0
    %493 = vmatpush1.msra.mxu0 %v156
    %494 = vmatprep.subr.mxu0 0.0
    %495 = vmatpush1.msra.mxu0 %v157
    %496 = vmatprep.subr.mxu0 0.0
    %497 = vmatpush1.msra.mxu0 %v158
    %498 = vmatprep.subr.mxu0 0.0
    %499 = vmatpush1.msra.mxu0 %v159
    %500 = vmatprep.subr.mxu0 0.0
    %501 = vmatpush1.msra.mxu0 %v160
    %502 = vmatprep.subr.mxu0 0.0
    %503 = vmatpush1.msra.mxu0 %v161
    %504 = vmatprep.subr.mxu0 0.0
    %505 = vmatpush1.msra.mxu0 %v162
    %506 = vmatprep.subr.mxu0 0.0
    %507 = vmatpush1.msra.mxu0 %v163
    %508 = vmatprep.subr.mxu0 0.0
    %509 = vmatpush1.msra.mxu0 %v164
    %510 = vmatprep.subr.mxu0 0.0
    %511 = vmatpush1.msra.mxu0 %v165
    %512 = vmatprep.subr.mxu0 0.0
    %513 = vmatpush1.msra.mxu0 %v166
    %514 = vmatprep.subr.mxu0 0.0
    %515 = vmatpush1.msra.mxu0 %v167
    %516 = vmatprep.subr.mxu0 0.0
    %517 = vmatpush1.msra.mxu0 %v168
    %518 = vmatprep.subr.mxu0 0.0
    %519 = vmatpush1.msra.mxu0 %v169
    %520 = vmatprep.mubr.f32.mxu0 %v229
    %521 = vmatmul.mubr.f32.gmra.mrb[0].mxu0 %v227
    %v522 = vpop.f32.mrb[0].mxu0
    %v523 = vadd.f32 %v453, %v522
    %v524 = vpop.f32.mrb[0].mxu0
    %525 = vdwg.mxu0
    %526 = vmatprep.subr.mxu0 0.0
    %527 = vmatpush1.msra.mxu0 %v170
    %528 = vmatprep.subr.mxu0 0.0
    %529 = vmatpush1.msra.mxu0 %v171
    %530 = vmatprep.subr.mxu0 0.0
    %531 = vmatpush1.msra.mxu0 %v172
    %532 = vmatprep.subr.mxu0 0.0
    %533 = vmatpush1.msra.mxu0 %v173
    %534 = vmatprep.subr.mxu0 0.0
    %535 = vmatpush1.msra.mxu0 %v174
    %536 = vmatprep.subr.mxu0 0.0
    %537 = vmatpush1.msra.mxu0 %v175
    %538 = vmatprep.subr.mxu0 0.0
    %539 = vmatpush1.msra.mxu0 %v176
    %540 = vmatprep.subr.mxu0 0.0
    %541 = vmatpush1.msra.mxu0 %v177
    %542 = vmatprep.subr.mxu0 0.0
    %543 = vmatpush1.msra.mxu0 %v178
    %544 = vmatprep.subr.mxu0 0.0
    %545 = vmatpush1.msra.mxu0 %v179
    %546 = vmatprep.subr.mxu0 0.0
    %547 = vmatpush1.msra.mxu0 %v180
    %548 = vmatprep.subr.mxu0 0.0
    %549 = vmatpush1.msra.mxu0 %v181
    %550 = vmatprep.subr.mxu0 0.0
    %551 = vmatpush1.msra.mxu0 %v182
    %552 = vmatprep.subr.mxu0 0.0
    %553 = vmatpush1.msra.mxu0 %v183
    %554 = vmatprep.subr.mxu0 0.0
    %555 = vmatpush1.msra.mxu0 %v184
    %556 = vmatprep.subr.mxu0 0.0
    %557 = vmatpush1.msra.mxu0 %v185
    %558 = vmatprep.subr.mxu0 0.0
    %559 = vmatpush1.msra.mxu0 0.0
    %560 = vmatprep.subr.mxu0 0.0
    %561 = vmatpush1.msra.mxu0 0.0
    %562 = vmatprep.subr.mxu0 0.0
    %563 = vmatpush1.msra.mxu0 0.0
    %564 = vmatprep.subr.mxu0 0.0
    %565 = vmatpush1.msra.mxu0 0.0
    %566 = vmatprep.subr.mxu0 0.0
    %567 = vmatpush1.msra.mxu0 0.0
    %568 = vmatprep.subr.mxu0 0.0
    %569 = vmatpush1.msra.mxu0 0.0
    %570 = vmatprep.subr.mxu0 0.0
    %571 = vmatpush1.msra.mxu0 0.0
    %572 = vmatprep.subr.mxu0 0.0
    %573 = vmatpush1.msra.mxu0 0.0
    %574 = vmatprep.subr.mxu0 0.0
    %575 = vmatpush1.msra.mxu0 0.0
    %576 = vmatprep.subr.mxu0 0.0
    %577 = vmatpush1.msra.mxu0 0.0
    %578 = vmatprep.subr.mxu0 0.0
    %579 = vmatpush1.msra.mxu0 0.0
    %580 = vmatprep.subr.mxu0 0.0
    %581 = vmatpush1.msra.mxu0 0.0
    %582 = vmatprep.subr.mxu0 0.0
    %583 = vmatpush1.msra.mxu0 0.0
    %584 = vmatprep.subr.mxu0 0.0
    %585 = vmatpush1.msra.mxu0 0.0
    %586 = vmatprep.subr.mxu0 0.0
    %587 = vmatpush1.msra.mxu0 0.0
    %588 = vmatprep.subr.mxu0 0.0
    %589 = vmatpush1.msra.mxu0 0.0
    %590 = vmatprep.mubr.f32.mxu0 0.0
    %591 = vmatmul.mubr.f32.gmra.mrb[0].mxu0 %v236
    %v592 = vpop.f32.mrb[0].mxu0
    %v593 = vadd.f32 %v523, %v592
    %v594 = vpop.f32.mrb[0].mxu0
    %595 = vdwg.mxu0
    %v596 = vmax.f32 %v593, 0.0
    %v597 = vld [vmem:[%s3] sm:$0xff]
    %v598 = vld [vmem:[%s3 + $0x8] sm:$0xff]
    %v599 = vld [vmem:[%s3 + $0x10] sm:$0xff]
    %v600 = vld [vmem:[%s3 + $0x18] sm:$0xff]
    %v601 = vld [vmem:[%s3 + $0x20] sm:$0xff]
    %v602 = vld [vmem:[%s3 + $0x28] sm:$0xff]
    %v603 = vld [vmem:[%s3 + $0x30] sm:$0xff]
    %v604 = vld [vmem:[%s3 + $0x38] sm:$0xff]
    %v605 = vld [vmem:[%s3 + $0x40] sm:$0xff]
    %v606 = vld [vmem:[%s3 + $0x48] sm:$0xff]
    %v607 = vld [vmem:[%s3 + $0x50] sm:$0xff]
    %v608 = vld [vmem:[%s3 + $0x58] sm:$0xff]
    %v609 = vld [vmem:[%s3 + $0x60] sm:$0xff]
    %v610 = vld [vmem:[%s3 + $0x68] sm:$0xff]
    %v611 = vld [vmem:[%s3 + $0x70] sm:$0xff]
    %v612 = vld [vmem:[%s4] sm:$0x1]
    %v614 = vlaneseq
    %v615 = vshrl.u32 %v614, 7
    %v616 = vsub.s32 0, %v615
    %v617 = vrot.slane %v612, %v616
    %vm619 = vcmask 982016
    %v621 = vsel %vm619, %v596, 0
    %623 = vmatprep.subr.mxu0 0.0
    %624 = vmatpush1.msra.mxu0 %v597
    %625 = vmatprep.subr.mxu0 0.0
    %626 = vmatpush1.msra.mxu0 %v598
    %627 = vmatprep.subr.mxu0 0.0
    %628 = vmatpush1.msra.mxu0 %v599
    %629 = vmatprep.subr.mxu0 0.0
    %630 = vmatpush1.msra.mxu0 %v600
    %631 = vmatprep.subr.mxu0 0.0
    %632 = vmatpush1.msra.mxu0 %v601
    %633 = vmatprep.subr.mxu0 0.0
    %634 = vmatpush1.msra.mxu0 %v602
    %635 = vmatprep.subr.mxu0 0.0
    %636 = vmatpush1.msra.mxu0 %v603
    %637 = vmatprep.subr.mxu0 0.0
    %638 = vmatpush1.msra.mxu0 %v604
    %639 = vmatprep.subr.mxu0 0.0
    %640 = vmatpush1.msra.mxu0 %v605
    %641 = vmatprep.subr.mxu0 0.0
    %642 = vmatpush1.msra.mxu0 %v606
    %643 = vmatprep.subr.mxu0 0.0
    %644 = vmatpush1.msra.mxu0 %v607
    %645 = vmatprep.subr.mxu0 0.0
    %646 = vmatpush1.msra.mxu0 %v608
    %647 = vmatprep.subr.mxu0 0.0
    %648 = vmatpush1.msra.mxu0 %v609
    %649 = vmatprep.subr.mxu0 0.0
    %650 = vmatpush1.msra.mxu0 %v610
    %651 = vmatprep.subr.mxu0 0.0
    %652 = vmatpush1.msra.mxu0 %v611
    %653 = vmatprep.subr.mxu0 0.0
    %654 = vmatpush1.msra.mxu0 0.0
    %655 = vmatprep.subr.mxu0 0.0
    %656 = vmatpush1.msra.mxu0 0.0
    %657 = vmatprep.subr.mxu0 0.0
    %658 = vmatpush1.msra.mxu0 0.0
    %659 = vmatprep.subr.mxu0 0.0
    %660 = vmatpush1.msra.mxu0 0.0
    %661 = vmatprep.subr.mxu0 0.0
    %662 = vmatpush1.msra.mxu0 0.0
    %663 = vmatprep.subr.mxu0 0.0
    %664 = vmatpush1.msra.mxu0 0.0
    %665 = vmatprep.subr.mxu0 0.0
    %666 = vmatpush1.msra.mxu0 0.0
    %667 = vmatprep.subr.mxu0 0.0
    %668 = vmatpush1.msra.mxu0 0.0
    %669 = vmatprep.subr.mxu0 0.0
    %670 = vmatpush1.msra.mxu0 0.0
    %671 = vmatprep.subr.mxu0 0.0
    %672 = vmatpush1.msra.mxu0 0.0
    %673 = vmatprep.subr.mxu0 0.0
    %674 = vmatpush1.msra.mxu0 0.0
    %675 = vmatprep.subr.mxu0 0.0
    %676 = vmatpush1.msra.mxu0 0.0
    %677 = vmatprep.subr.mxu0 0.0
    %678 = vmatpush1.msra.mxu0 0.0
    %679 = vmatprep.subr.mxu0 0.0
    %680 = vmatpush1.msra.mxu0 0.0
    %681 = vmatprep.subr.mxu0 0.0
    %682 = vmatpush1.msra.mxu0 0.0
    %683 = vmatprep.subr.mxu0 0.0
    %684 = vmatpush1.msra.mxu0 0.0
    %685 = vmatprep.subr.mxu0 0.0
    %686 = vmatpush1.msra.mxu0 0.0
    %687 = vmatprep.mubr.f32.mxu0 0.0
    %688 = vmatmul.mubr.f32.gmra.mrb[0].mxu0 %v621
    %v689 = vpop.f32.mrb[0].mxu0
    %v690 = vadd.f32 %v617, %v689
    %v691 = vpop.f32.mrb[0].mxu0
    %692 = vdwg.mxu0
    %v693 = vmax.f32 %v690, 0.0
    %v694 = vld [vmem:[%s5] sm:$0xff]
    %v695 = vld [vmem:[%s5 + $0x8] sm:$0xff]
    %v696 = vld [vmem:[%s5 + $0x10] sm:$0xff]
    %v697 = vld [vmem:[%s5 + $0x18] sm:$0xff]
    %v698 = vld [vmem:[%s5 + $0x20] sm:$0xff]
    %v699 = vld [vmem:[%s5 + $0x28] sm:$0xff]
    %v700 = vld [vmem:[%s6] sm:$0x1]
    %v702 = vlaneseq
    %v703 = vshrl.u32 %v702, 7
    %v704 = vsub.s32 0, %v703
    %v705 = vrot.slane %v700, %v704
    %vm707 = vcmask 392192
    %v709 = vsel %vm707, %v693, 0
    %711 = vmatprep.subr.mxu0 0.0
    %712 = vmatpush1.msra.mxu0 %v694
    %713 = vmatprep.subr.mxu0 0.0
    %714 = vmatpush1.msra.mxu0 %v695
    %715 = vmatprep.subr.mxu0 0.0
    %716 = vmatpush1.msra.mxu0 %v696
    %717 = vmatprep.subr.mxu0 0.0
    %718 = vmatpush1.msra.mxu0 %v697
    %719 = vmatprep.subr.mxu0 0.0
    %720 = vmatpush1.msra.mxu0 %v698
    %721 = vmatprep.subr.mxu0 0.0
    %722 = vmatpush1.msra.mxu0 %v699
    %723 = vmatprep.subr.mxu0 0.0
    %724 = vmatpush1.msra.mxu0 0.0
    %725 = vmatprep.subr.mxu0 0.0
    %726 = vmatpush1.msra.mxu0 0.0
    %727 = vmatprep.subr.mxu0 0.0
    %728 = vmatpush1.msra.mxu0 0.0
    %729 = vmatprep.subr.mxu0 0.0
    %730 = vmatpush1.msra.mxu0 0.0
    %731 = vmatprep.subr.mxu0 0.0
    %732 = vmatpush1.msra.mxu0 0.0
    %733 = vmatprep.subr.mxu0 0.0
    %734 = vmatpush1.msra.mxu0 0.0
    %735 = vmatprep.subr.mxu0 0.0
    %736 = vmatpush1.msra.mxu0 0.0
    %737 = vmatprep.subr.mxu0 0.0
    %738 = vmatpush1.msra.mxu0 0.0
    %739 = vmatprep.subr.mxu0 0.0
    %740 = vmatpush1.msra.mxu0 0.0
    %741 = vmatprep.subr.mxu0 0.0
    %742 = vmatpush1.msra.mxu0 0.0
    %743 = vmatprep.subr.mxu0 0.0
    %744 = vmatpush1.msra.mxu0 0.0
    %745 = vmatprep.subr.mxu0 0.0
    %746 = vmatpush1.msra.mxu0 0.0
    %747 = vmatprep.subr.mxu0 0.0
    %748 = vmatpush1.msra.mxu0 0.0
    %749 = vmatprep.subr.mxu0 0.0
    %750 = vmatpush1.msra.mxu0 0.0
    %751 = vmatprep.subr.mxu0 0.0
    %752 = vmatpush1.msra.mxu0 0.0
    %753 = vmatprep.subr.mxu0 0.0
    %754 = vmatpush1.msra.mxu0 0.0
    %755 = vmatprep.subr.mxu0 0.0
    %756 = vmatpush1.msra.mxu0 0.0
    %757 = vmatprep.subr.mxu0 0.0
    %758 = vmatpush1.msra.mxu0 0.0
    %759 = vmatprep.subr.mxu0 0.0
    %760 = vmatpush1.msra.mxu0 0.0
    %761 = vmatprep.subr.mxu0 0.0
    %762 = vmatpush1.msra.mxu0 0.0
    %763 = vmatprep.subr.mxu0 0.0
    %764 = vmatpush1.msra.mxu0 0.0
    %765 = vmatprep.subr.mxu0 0.0
    %766 = vmatpush1.msra.mxu0 0.0
    %767 = vmatprep.subr.mxu0 0.0
    %768 = vmatpush1.msra.mxu0 0.0
    %769 = vmatprep.subr.mxu0 0.0
    %770 = vmatpush1.msra.mxu0 0.0
    %771 = vmatprep.subr.mxu0 0.0
    %772 = vmatpush1.msra.mxu0 0.0
    %773 = vmatprep.subr.mxu0 0.0
    %774 = vmatpush1.msra.mxu0 0.0
    %775 = vmatprep.mubr.f32.mxu0 0.0
    %776 = vmatmul.mubr.f32.gmra.mrb[0].mxu0 %v709
    %v777 = vpop.f32.mrb[0].mxu0
    %v778 = vadd.f32 %v705, %v777
    %v779 = vpop.f32.mrb[0].mxu0
    %780 = vdwg.mxu0
    %v781 = vmax.f32 %v778, 0.0
    %v782 = vld [vmem:[%s7] sm:$0xff]
    %v783 = vld [vmem:[%s7 + $0x8] sm:$0xff]
    %v784 = vld [vmem:[%s7 + $0x10] sm:$0xff]
    %v785 = vld [vmem:[%s7 + $0x18] sm:$0xff]
    %v786 = vld [vmem:[%s7 + $0x20] sm:$0xff]
    %v787 = vld [vmem:[%s7 + $0x28] sm:$0xff]
    %v788 = vld [vmem:[%s8] sm:$0x1]
    %v790 = vlaneseq
    %v791 = vshrl.u32 %v790, 7
    %v792 = vsub.s32 0, %v791
    %v793 = vrot.slane %v788, %v792
    %v796 = vsel %vm707, %v781, 0
    %798 = vmatprep.subr.mxu0 0.0
    %799 = vmatpush1.msra.mxu0 %v782
    %800 = vmatprep.subr.mxu0 0.0
    %801 = vmatpush1.msra.mxu0 %v783
    %802 = vmatprep.subr.mxu0 0.0
    %803 = vmatpush1.msra.mxu0 %v784
    %804 = vmatprep.subr.mxu0 0.0
    %805 = vmatpush1.msra.mxu0 %v785
    %806 = vmatprep.subr.mxu0 0.0
    %807 = vmatpush1.msra.mxu0 %v786
    %808 = vmatprep.subr.mxu0 0.0
    %809 = vmatpush1.msra.mxu0 %v787
    %810 = vmatprep.subr.mxu0 0.0
    %811 = vmatpush1.msra.mxu0 0.0
    %812 = vmatprep.subr.mxu0 0.0
    %813 = vmatpush1.msra.mxu0 0.0
    %814 = vmatprep.subr.mxu0 0.0
    %815 = vmatpush1.msra.mxu0 0.0
    %816 = vmatprep.subr.mxu0 0.0
    %817 = vmatpush1.msra.mxu0 0.0
    %818 = vmatprep.subr.mxu0 0.0
    %819 = vmatpush1.msra.mxu0 0.0
    %820 = vmatprep.subr.mxu0 0.0
    %821 = vmatpush1.msra.mxu0 0.0
    %822 = vmatprep.subr.mxu0 0.0
    %823 = vmatpush1.msra.mxu0 0.0
    %824 = vmatprep.subr.mxu0 0.0
    %825 = vmatpush1.msra.mxu0 0.0
    %826 = vmatprep.subr.mxu0 0.0
    %827 = vmatpush1.msra.mxu0 0.0
    %828 = vmatprep.subr.mxu0 0.0
    %829 = vmatpush1.msra.mxu0 0.0
    %830 = vmatprep.subr.mxu0 0.0
    %831 = vmatpush1.msra.mxu0 0.0
    %832 = vmatprep.subr.mxu0 0.0
    %833 = vmatpush1.msra.mxu0 0.0
    %834 = vmatprep.subr.mxu0 0.0
    %835 = vmatpush1.msra.mxu0 0.0
    %836 = vmatprep.subr.mxu0 0.0
    %837 = vmatpush1.msra.mxu0 0.0
    %838 = vmatprep.subr.mxu0 0.0
    %839 = vmatpush1.msra.mxu0 0.0
    %840 = vmatprep.subr.mxu0 0.0
    %841 = vmatpush1.msra.mxu0 0.0
    %842 = vmatprep.subr.mxu0 0.0
    %843 = vmatpush1.msra.mxu0 0.0
    %844 = vmatprep.subr.mxu0 0.0
    %845 = vmatpush1.msra.mxu0 0.0
    %846 = vmatprep.subr.mxu0 0.0
    %847 = vmatpush1.msra.mxu0 0.0
    %848 = vmatprep.subr.mxu0 0.0
    %849 = vmatpush1.msra.mxu0 0.0
    %850 = vmatprep.subr.mxu0 0.0
    %851 = vmatpush1.msra.mxu0 0.0
    %852 = vmatprep.subr.mxu0 0.0
    %853 = vmatpush1.msra.mxu0 0.0
    %854 = vmatprep.subr.mxu0 0.0
    %855 = vmatpush1.msra.mxu0 0.0
    %856 = vmatprep.subr.mxu0 0.0
    %857 = vmatpush1.msra.mxu0 0.0
    %858 = vmatprep.subr.mxu0 0.0
    %859 = vmatpush1.msra.mxu0 0.0
    %860 = vmatprep.subr.mxu0 0.0
    %861 = vmatpush1.msra.mxu0 0.0
    %862 = vmatprep.mubr.f32.mxu0 0.0
    %863 = vmatmul.mubr.f32.gmra.mrb[0].mxu0 %v796
    %v864 = vpop.f32.mrb[0].mxu0
    %v865 = vadd.f32 %v793, %v864
    %v866 = vpop.f32.mrb[0].mxu0
    %867 = vdwg.mxu0
    %v868 = vmax.f32 %v865, 0.0
    %v869 = vld [vmem:[%s9] sm:$0xff]
    %v870 = vld [vmem:[%s9 + $0x8] sm:$0xff]
    %v871 = vld [vmem:[%s9 + $0x10] sm:$0xff]
    %v872 = vld [vmem:[%s9 + $0x18] sm:$0xff]
    %v873 = vld [vmem:[%s9 + $0x20] sm:$0xff]
    %v874 = vld [vmem:[%s9 + $0x28] sm:$0xff]
    %v875 = vld [vmem:[%s10] sm:$0x1]
    %v877 = vlaneseq
    %v878 = vshrl.u32 %v877, 7
    %v879 = vsub.s32 0, %v878
    %v880 = vrot.slane %v875, %v879
    %v883 = vsel %vm707, %v868, 0
    %885 = vmatprep.subr.mxu0 0.0
    %886 = vmatpush1.msra.mxu0 %v869
    %887 = vmatprep.subr.mxu0 0.0
    %888 = vmatpush1.msra.mxu0 %v870
    %889 = vmatprep.subr.mxu0 0.0
    %890 = vmatpush1.msra.mxu0 %v871
    %891 = vmatprep.subr.mxu0 0.0
    %892 = vmatpush1.msra.mxu0 %v872
    %893 = vmatprep.subr.mxu0 0.0
    %894 = vmatpush1.msra.mxu0 %v873
    %895 = vmatprep.subr.mxu0 0.0
    %896 = vmatpush1.msra.mxu0 %v874
    %897 = vmatprep.subr.mxu0 0.0
    %898 = vmatpush1.msra.mxu0 0.0
    %899 = vmatprep.subr.mxu0 0.0
    %900 = vmatpush1.msra.mxu0 0.0
    %901 = vmatprep.subr.mxu0 0.0
    %902 = vmatpush1.msra.mxu0 0.0
    %903 = vmatprep.subr.mxu0 0.0
    %904 = vmatpush1.msra.mxu0 0.0
    %905 = vmatprep.subr.mxu0 0.0
    %906 = vmatpush1.msra.mxu0 0.0
    %907 = vmatprep.subr.mxu0 0.0
    %908 = vmatpush1.msra.mxu0 0.0
    %909 = vmatprep.subr.mxu0 0.0
    %910 = vmatpush1.msra.mxu0 0.0
    %911 = vmatprep.subr.mxu0 0.0
    %912 = vmatpush1.msra.mxu0 0.0
    %913 = vmatprep.subr.mxu0 0.0
    %914 = vmatpush1.msra.mxu0 0.0
    %915 = vmatprep.subr.mxu0 0.0
    %916 = vmatpush1.msra.mxu0 0.0
    %917 = vmatprep.subr.mxu0 0.0
    %918 = vmatpush1.msra.mxu0 0.0
    %919 = vmatprep.subr.mxu0 0.0
    %920 = vmatpush1.msra.mxu0 0.0
    %921 = vmatprep.subr.mxu0 0.0
    %922 = vmatpush1.msra.mxu0 0.0
    %923 = vmatprep.subr.mxu0 0.0
    %924 = vmatpush1.msra.mxu0 0.0
    %925 = vmatprep.subr.mxu0 0.0
    %926 = vmatpush1.msra.mxu0 0.0
    %927 = vmatprep.subr.mxu0 0.0
    %928 = vmatpush1.msra.mxu0 0.0
    %929 = vmatprep.subr.mxu0 0.0
    %930 = vmatpush1.msra.mxu0 0.0
    %931 = vmatprep.subr.mxu0 0.0
    %932 = vmatpush1.msra.mxu0 0.0
    %933 = vmatprep.subr.mxu0 0.0
    %934 = vmatpush1.msra.mxu0 0.0
    %935 = vmatprep.subr.mxu0 0.0
    %936 = vmatpush1.msra.mxu0 0.0
    %937 = vmatprep.subr.mxu0 0.0
    %938 = vmatpush1.msra.mxu0 0.0
    %939 = vmatprep.subr.mxu0 0.0
    %940 = vmatpush1.msra.mxu0 0.0
    %941 = vmatprep.subr.mxu0 0.0
    %942 = vmatpush1.msra.mxu0 0.0
    %943 = vmatprep.subr.mxu0 0.0
    %944 = vmatpush1.msra.mxu0 0.0
    %945 = vmatprep.subr.mxu0 0.0
    %946 = vmatpush1.msra.mxu0 0.0
    %947 = vmatprep.subr.mxu0 0.0
    %948 = vmatpush1.msra.mxu0 0.0
    %949 = vmatprep.mubr.f32.mxu0 0.0
    %950 = vmatmul.mubr.f32.gmra.mrb[0].mxu0 %v883
    %v951 = vpop.f32.mrb[0].mxu0
    %v952 = vadd.f32 %v880, %v951
    %v953 = vpop.f32.mrb[0].mxu0
    %954 = vdwg.mxu0
    %vm955 = vcmask 189440
    %956 = vst.msk [vmem:[#allocation2] sm:$0x3] %vm955, %v952
    // Predicated region
    $region46: #{_net_forward_impl.3} parent=1 // pred_check
      _
    $region47: #{_net_forward_impl.3} parent=1 // pred_check_branch
      %958 = sbr.rel (0) target = $region49
    $region48: #{_net_forward_impl.3} parent=1 // pred_region
      %s960 = ssub.s32 32, 32
      %961 = vsyncadd [#allocation3], %s960
      %s963 = sshll.u32 [#allocation2], 4
      %s964 = int_to_ptr.vmem [resolvable:$true] %s963
      %966 = dma.vmem_to_hbm [thread:$0]  %s964, 32, %s11, [#allocation3]
    $region49: #{_net_forward_impl.3} parent=1 // pred_fallthru
      _
    // Predicated region
    $region50: #{_net_forward_impl.3} parent=1 // pred_check
      _
    $region51: #{_net_forward_impl.3} parent=1 // pred_check_branch
      %968 = sbr.rel (0) target = $region53
    $region52: #{_net_forward_impl.3} parent=1 // pred_region
      %969 = dma.done [#allocation3], 32
    $region53: #{_net_forward_impl.3} parent=1 // pred_fallthru
      _
    %970 = vsyncpa [#allocation3], 1

</llo_original>
